<compile_context>
chip_gen: v7x
topology: tpu7x:2x2x1
jax: 0.10.0
libtpu: 0.0.40
codegen_flags: <defaults>
</compile_context>

<pallas_src>
import functools

import jax
import jax.numpy as jnp
import numpy as np
from jax.experimental import pallas as pl
from jax.experimental.pallas import tpu as pltpu

EPS = 1e-5
_ALIGN = 128   # lane alignment for the compute width and the halo apron
_SUB = 8       # f32 sublane tile (per-tap channel stride is padded to this)


def _round_up(x, m):
    return (x + m - 1) // m * m


# ----------------------------------------------------------------------------
# Fused kernel: conv1 -> BN -> ReLU -> conv2 (+ fused residual) -> BN -> ReLU
# ----------------------------------------------------------------------------
def _fused_kernel(src_ref, mask_ref, bnp_ref, w1_ref, w2_ref, o_ref, *scratch,
                  K, Wp, LTO, APRON, n_valid, CIP, COP, build_p1, has_proj):
    """Flat layout: column q = n*(Hp*Wp) + i*Wp + j (rows of width Wp per padded
    image).  A conv tap (dh, dw) is then a plain lane-offset slice of length
    LTO; `mask` marks the columns that are real output pixels."""
    if build_p1:
        p1_ref, p2_ref, xp2_ref = scratch
    else:
        p2_ref, xp2_ref = scratch

    f32 = jnp.float32
    mask = mask_ref[...]                      # (1, LTO)
    inv_n = 1.0 / float(n_valid)
    bnp = bnp_ref[...]                        # (COP, 4) coalesced BN params
    g1, be1 = bnp[:, 0:1], bnp[:, 1:2]
    g2, be2 = bnp[:, 2:3], bnp[:, 3:4]

    def bn_relu(s, gamma, beta):
        # Training-mode BatchNorm over valid output positions, then ReLU.
        # One-pass stats (sum, sum of squares) -> both reductions issue
        # back-to-back; per-channel factors folded into one scale/shift.
        sm = s * mask
        s1 = jnp.sum(sm, axis=1, keepdims=True)        # (COP, 1)
        s2 = jnp.sum(s * sm, axis=1, keepdims=True)    # (COP, 1)
        mean = s1 * inv_n
        var = jnp.maximum(s2 * inv_n - mean * mean, 0.0)
        scale = jax.lax.rsqrt(var + EPS) * gamma       # (COP, 1)
        shift = beta - mean * scale                    # (COP, 1)
        return jnp.maximum(s * scale + shift, 0.0)

    # ---- conv1 im2col: 9 lane-offset slices of the flat padded input
    # (stride > 1: patches were pre-built by the wrapper, src IS the patch mat)
    if build_p1:
        for dh in range(K):
            for dw in range(K):
                t = dh * K + dw
                off = dh * Wp + dw
                p1_ref[t * CIP:(t + 1) * CIP, :] = src_ref[:, off:off + LTO]
        p1_view = p1_ref
    else:
        p1_view = src_ref

    ctr = (K // 2) * K + (K // 2)                      # centre tap == raw x
    xres = p1_view[ctr * CIP:(ctr + 1) * CIP, :]       # residual input (CIP, LTO)

    # ---- conv1: single MXU matmul (no bias: it cancels in training-mode BN)
    h1 = jnp.dot(w1_ref[...], p1_view[...], preferred_element_type=f32)
    a1 = bn_relu(h1, g1, be1) * mask                   # zero invalid/halo columns

    # ---- conv2: zero only the halo aprons, store a1 lane-aligned in between
    xp2_ref[:, :APRON] = jnp.zeros((COP, APRON), f32)
    xp2_ref[:, APRON + LTO:] = jnp.zeros((COP, APRON), f32)
    xp2_ref[:, APRON:APRON + LTO] = a1
    half = K // 2
    for dh in range(K):
        for dw in range(K):
            t = dh * K + dw
            off = APRON + (dh - half) * Wp + (dw - half)
            p2_ref[t * COP:(t + 1) * COP, :] = xp2_ref[:, off:off + LTO]
    if has_proj:
        # 1x1 projection fused into conv2's contraction: extra CIP rows of x.
        p2_ref[K * K * COP:, :] = xres

    h2 = jnp.dot(w2_ref[...], p2_ref[...], preferred_element_type=f32)
    if not has_proj:
        h2 = h2 + xres                                  # identity residual (CIP == COP)

    # ---- add -> BN -> ReLU; invalid columns are sliced away by the wrapper.
    o_ref[...] = bn_relu(h2, g2, be2).astype(o_ref.dtype)


# ----------------------------------------------------------------------------
# Weight packing (call ONCE, outside jit)
# ----------------------------------------------------------------------------
def pack_params(p):
    w1 = np.asarray(p["w1"], np.float32)
    w2 = np.asarray(p["w2"], np.float32)
    cout, cin, K, _ = w1.shape
    CIP = _round_up(cin, _SUB)
    COP = _round_up(cout, _SUB)
    has_proj = "wp" in p

    # conv1 weight -> (COP, K*K*CIP); column index = (dh*K+dw)*CIP + c.
    w1p = np.zeros((COP, K, K, CIP), np.float32)
    w1p[:cout, :, :, :cin] = np.transpose(w1, (0, 2, 3, 1))
    w1p = w1p.reshape(COP, K * K * CIP)

    # conv2 weight -> (COP, K*K*COP [+ CIP]); the 1x1 projection (if any) is
    # appended along the contraction dim so conv2 + projection = ONE matmul.
    w2p = np.zeros((COP, K, K, COP), np.float32)
    w2p[:cout, :, :, :cout] = np.transpose(w2, (0, 2, 3, 1))
    w2p = w2p.reshape(COP, K * K * COP)
    if has_proj:
        wpp = np.zeros((COP, CIP), np.float32)
        wpp[:cout, :cin] = np.asarray(p["wp"], np.float32).reshape(cout, cin)
        w2p = np.concatenate([w2p, wpp], axis=1)

    # BN affine params coalesced into one tiny (COP, 4) input.  Conv biases
    # b1/b2/bp are dropped on purpose (they cancel under training-mode BN).
    bnp = np.zeros((COP, 4), np.float32)
    bnp[:cout, 0] = np.asarray(p["g1"], np.float32)
    bnp[:cout, 1] = np.asarray(p["be1"], np.float32)
    bnp[:cout, 2] = np.asarray(p["g2"], np.float32)
    bnp[:cout, 3] = np.asarray(p["be2"], np.float32)

    packed = {"w1": jnp.asarray(w1p), "w2": jnp.asarray(w2p), "bn": jnp.asarray(bnp)}
    cfg = dict(K=K, cin=cin, cout=cout, cin_pad=CIP, cout_pad=COP, has_proj=has_proj)
    return packed, cfg


# ----------------------------------------------------------------------------
# Wrapper
# ----------------------------------------------------------------------------
def resid_conv_block_forward(x_nchw, packed, *, cfg, stride=1):
    K = cfg["K"]
    if K != 3:
        raise ValueError("residual add only shape-checks for k_size=3, padding=1")
    N, Cin, H, W = x_nchw.shape
    cout, CIP, COP = cfg["cout"], cfg["cin_pad"], cfg["cout_pad"]
    has_proj = cfg["has_proj"]
    if not has_proj and stride != 1:
        raise ValueError("identity residual requires stride == 1 (as in the PyTorch module)")

    Ho = (H - 1) // stride + 1            # k=3, pad=1 conv output (and residual) extent
    Wo = (W - 1) // stride + 1
    Hp, Wp = Ho + 2, Wo + 2               # padded per-image frame (conv2 halo)
    F = Hp * Wp
    LTO = _round_up(N * F, _ALIGN)        # lane-aligned compute / store width
    APRON = _round_up(Wp + 1, _ALIGN)     # conv2 zero apron (128-aligned)
    n_valid = N * Ho * Wo
    f32 = jnp.float32

    x_c = jnp.transpose(x_nchw, (1, 0, 2, 3)).astype(f32)      # (Cin, N, H, W)

    # Static valid-column mask (tiny constant).
    q = np.arange(LTO)
    valid = (q < N * F) & ((q // Wp) % Hp < Ho) & (q % Wp < Wo)
    mask = jnp.asarray(valid.astype(np.float32)[None, :])

    build_p1 = (stride == 1)
    if build_p1:
        # Zero-halo flat input, channels padded to the sublane tile so every
        # in-kernel tap-slab store is sublane-aligned.
        L_src = LTO + _round_up((K - 1) * Wp + (K - 1), _ALIGN)
        xpad = jnp.pad(x_c, ((0, CIP - Cin), (0, 0), (1, 1), (1, 1)))   # (CIP,N,Hp,Wp)
        src = jnp.pad(xpad.reshape(CIP, N * F), ((0, 0), (0, L_src - N * F)))
    else:
        # stride > 1: pre-build conv1's strided im2col patches with XLA (folds
        # the stride, no stride^2 MXU waste).  The residual input is the centre
        # tap of these patches, so no separate strided-x array is needed.
        # TODO(synk): build strided taps in-kernel (strided pl.ds) to remove the
        # ~K*K x HBM amplification once inputs are no longer tiny.
        xpad = jnp.pad(x_c, ((0, 0), (0, 0), (1, 1), (1, 1)))
        taps = []
        for dh in range(K):
            for dw in range(K):
                taps.append(xpad[:, :, dh:dh + (Ho - 1) * stride + 1:stride,
                                 dw:dw + (Wo - 1) * stride + 1:stride])
        pt = jnp.stack(taps, axis=0)                              # (K*K,Cin,N,Ho,Wo)
        pt = jnp.pad(pt, ((0, 0), (0, CIP - Cin), (0, 0), (0, 0), (0, 0)))
        canvas = jnp.zeros((K * K, CIP, N, Hp, Wp), f32).at[:, :, :, :Ho, :Wo].set(pt)
        src = jnp.pad(canvas.reshape(K * K * CIP, N * F), ((0, 0), (0, LTO - N * F)))

    inputs = [src, mask, packed["bn"], packed["w1"], packed["w2"]]

    p2_rows = K * K * COP + (CIP if has_proj else 0)
    scratch = []
    if build_p1:
        scratch.append(pltpu.VMEM((K * K * CIP, LTO), f32))       # conv1 im2col
    scratch += [pltpu.VMEM((p2_rows, LTO), f32),                  # conv2 im2col (+ resid rows)
                pltpu.VMEM((COP, LTO + 2 * APRON), f32)]          # conv2 zero-apron buffer

    def full_spec(a):
        zeros = (0,) * a.ndim
        return pl.BlockSpec(a.shape, lambda i, _z=zeros: _z)

    kernel = functools.partial(
        _fused_kernel, K=K, Wp=Wp, LTO=LTO, APRON=APRON, n_valid=n_valid,
        CIP=CIP, COP=COP, build_p1=build_p1, has_proj=has_proj)

    # Rough VMEM budget; raise the scoped limit only if we exceed the smallest
    # (v5e) default.  TODO(synk): tile the lane axis via a real grid before the
    # im2col scratch approaches the v7x 64 MiB ceiling.
    scratch_elems = ((K * K * CIP * LTO) if build_p1 else 0) \
        + p2_rows * LTO + COP * (LTO + 2 * APRON)
    in_elems = sum(int(np.prod(a.shape)) for a in inputs)
    vmem_bytes = 4 * (2 * in_elems + 2 * COP * LTO + scratch_elems)
    cp_kwargs = dict(dimension_semantics=("arbitrary",))
    if vmem_bytes > 16 * 1024 * 1024:
        cp_kwargs["vmem_limit_bytes"] = min(vmem_bytes + (8 << 20), 100 * 1024 * 1024)

    out = pl.pallas_call(
        kernel,
        grid=(1,),
        in_specs=[full_spec(a) for a in inputs],
        out_specs=pl.BlockSpec((COP, LTO), lambda i: (0, 0)),
        out_shape=jax.ShapeDtypeStruct((COP, LTO), f32),
        scratch_shapes=scratch,
        compiler_params=pltpu.CompilerParams(**cp_kwargs),
    )(*inputs)

    # Drop channel padding / halo / pad columns, return NCHW.
    out = out[:cout, :N * F].reshape(cout, N, Hp, Wp)[:, :, :Ho, :Wo]
    return jnp.transpose(out, (1, 0, 2, 3))


# ----------------------------------------------------------------------------
# Pure-JAX reference (correctness check; keeps conv biases, training-mode BN)
# ----------------------------------------------------------------------------
def _ref_forward(x, p, *, stride=1):
    def conv(xx, w, b, s, pad):
        y = jax.lax.conv_general_dilated(
            xx, w, (s, s), [(pad, pad), (pad, pad)],
            dimension_numbers=("NCHW", "OIHW", "NCHW"))
        return y + b[None, :, None, None]

    def bn_relu(xx, g, be):
        m = jnp.mean(xx, axis=(0, 2, 3), keepdims=True)
        v = jnp.var(xx, axis=(0, 2, 3), keepdims=True)
        y = (xx - m) / jnp.sqrt(v + EPS) * g[None, :, None, None] + be[None, :, None, None]
        return jnp.maximum(y, 0.0)

    h = conv(x, p["w1"], p["b1"], stride, 1)
    h = bn_relu(h, p["g1"], p["be1"])
    h = conv(h, p["w2"], p["b2"], 1, 1)
    r = conv(x, p["wp"], p["bp"], stride, 0) if "wp" in p else x
    return bn_relu(h + r, p["g2"], p["be2"])


# ----------------------------------------------------------------------------
if __name__ == "__main__":
    def make_params(key, cin, cout, K):
        ks = jax.random.split(key, 10)
        p = {
            "w1": 0.1 * jax.random.normal(ks[0], (cout, cin, K, K), jnp.float32),
            "b1": 0.1 * jax.random.normal(ks[1], (cout,), jnp.float32),
            "w2": 0.1 * jax.random.normal(ks[2], (cout, cout, K, K), jnp.float32),
            "b2": 0.1 * jax.random.normal(ks[3], (cout,), jnp.float32),
            "g1": 1.0 + 0.1 * jax.random.normal(ks[4], (cout,), jnp.float32),
            "be1": 0.1 * jax.random.normal(ks[5], (cout,), jnp.float32),
            "g2": 1.0 + 0.1 * jax.random.normal(ks[6], (cout,), jnp.float32),
            "be2": 0.1 * jax.random.normal(ks[7], (cout,), jnp.float32),
        }
        if cin != cout:
            p["wp"] = 0.1 * jax.random.normal(ks[8], (cout, cin, 1, 1), jnp.float32)
            p["bp"] = 0.1 * jax.random.normal(ks[9], (cout,), jnp.float32)
        return p

    key = jax.random.PRNGKey(0)
    kp1, kp2, kp3, kx1, kx2, kx3 = jax.random.split(key, 6)
    N, H, W, K = 2, 16, 16, 3

    cases = [
        ("projection cin=4 -> cout=8, stride=1", 4, 8, 1, kp1, kx1),
        ("identity   cin=8 -> cout=8, stride=1", 8, 8, 1, kp2, kx2),
        ("projection cin=4 -> cout=8, stride=2", 4, 8, 2, kp3, kx3),
    ]
    for name, cin, cout, stride, kp, kx in cases:
        params = make_params(kp, cin, cout, K)
        x = jax.random.normal(kx, (N, cin, H, W), jnp.float32)

        packed, cfg = pack_params(params)   # one-time weight packing, outside jit
        fwd = jax.jit(functools.partial(resid_conv_block_forward, cfg=cfg, stride=stride))
        out = jax.block_until_ready(fwd(x, packed))

        ref = jax.block_until_ready(_ref_forward(x, params, stride=stride))
        np.testing.assert_allclose(np.asarray(out), np.asarray(ref),
                                   rtol=1e-3, atol=1e-3, err_msg=name)

    print("KERNEL_OK")
</pallas_src>

<mosaic_0001>
module attributes {stable_mosaic.version = 11 : i64} {
  func.func @_fused_kernel(%arg0: i32, %arg1: memref<8x896xf32, #tpu.memory_space<vmem>>, %arg2: memref<1x768xf32, #tpu.memory_space<vmem>>, %arg3: memref<8x4xf32, #tpu.memory_space<vmem>>, %arg4: memref<8x72xf32, #tpu.memory_space<vmem>>, %arg5: memref<8x80xf32, #tpu.memory_space<vmem>>, %arg6: memref<8x768xf32, #tpu.memory_space<vmem>>, %arg7: memref<72x768xf32, #tpu.memory_space<vmem>>, %arg8: memref<80x768xf32, #tpu.memory_space<vmem>>, %arg9: memref<8x1024xf32, #tpu.memory_space<vmem>>) attributes {dimension_semantics = [#tpu.dimension_semantics<arbitrary>], iteration_bounds = array<i64: 1>, scalar_prefetch = 0 : i64, scratch_operands = 3 : i64, tpu.core_type = #tpu.core_type<tc>, window_params = [{pipeline_mode = #tpu.pipeline_mode<synchronous>, transform_indices = @transform_0, window_bounds = array<i64: 8, 896>}, {pipeline_mode = #tpu.pipeline_mode<synchronous>, transform_indices = @transform_1, window_bounds = array<i64: 1, 768>}, {pipeline_mode = #tpu.pipeline_mode<synchronous>, transform_indices = @transform_2, window_bounds = array<i64: 8, 4>}, {pipeline_mode = #tpu.pipeline_mode<synchronous>, transform_indices = @transform_3, window_bounds = array<i64: 8, 72>}, {pipeline_mode = #tpu.pipeline_mode<synchronous>, transform_indices = @transform_4, window_bounds = array<i64: 8, 80>}, {pipeline_mode = #tpu.pipeline_mode<synchronous>, transform_indices = @transform_5, window_bounds = array<i64: 8, 768>}]} {
    %c0 = arith.constant 0 : index
    %c0_0 = arith.constant 0 : index
    %0 = vector.load %arg2[%c0, %c0_0] : memref<1x768xf32, #tpu.memory_space<vmem>>, vector<1x768xf32>
    %c0_1 = arith.constant 0 : index
    %c0_2 = arith.constant 0 : index
    %1 = vector.load %arg3[%c0_1, %c0_2] : memref<8x4xf32, #tpu.memory_space<vmem>>, vector<8x4xf32>
    %2 = vector.extract_strided_slice %1 {offsets = [0, 0], sizes = [8, 1], strides = [1, 1]} : vector<8x4xf32> to vector<8x1xf32>
    %3 = vector.extract_strided_slice %1 {offsets = [0, 1], sizes = [8, 1], strides = [1, 1]} : vector<8x4xf32> to vector<8x1xf32>
    %4 = vector.extract_strided_slice %1 {offsets = [0, 2], sizes = [8, 1], strides = [1, 1]} : vector<8x4xf32> to vector<8x1xf32>
    %5 = vector.extract_strided_slice %1 {offsets = [0, 3], sizes = [8, 1], strides = [1, 1]} : vector<8x4xf32> to vector<8x1xf32>
    %c0_3 = arith.constant 0 : index
    %c0_4 = arith.constant 0 : index
    %6 = vector.load %arg1[%c0_3, %c0_4] : memref<8x896xf32, #tpu.memory_space<vmem>>, vector<8x768xf32>
    %c0_5 = arith.constant 0 : index
    %c0_6 = arith.constant 0 : index
    %7 = vector.load %arg7[%c0_5, %c0_6] : memref<72x768xf32, #tpu.memory_space<vmem>>, vector<8x768xf32>
    tpu.vector_store %arg7[%c0_5, %c0_6], %6 {strides = array<i32>} : memref<72x768xf32, #tpu.memory_space<vmem>>, vector<8x768xf32>,
    %c0_7 = arith.constant 0 : index
    %c1 = arith.constant 1 : index
    %8 = vector.load %arg1[%c0_7, %c1] : memref<8x896xf32, #tpu.memory_space<vmem>>, vector<8x768xf32>
    %c8 = arith.constant 8 : index
    %c0_8 = arith.constant 0 : index
    %9 = vector.load %arg7[%c8, %c0_8] : memref<72x768xf32, #tpu.memory_space<vmem>>, vector<8x768xf32>
    tpu.vector_store %arg7[%c8, %c0_8], %8 {strides = array<i32>} : memref<72x768xf32, #tpu.memory_space<vmem>>, vector<8x768xf32>,
    %c0_9 = arith.constant 0 : index
    %c2 = arith.constant 2 : index
    %10 = vector.load %arg1[%c0_9, %c2] : memref<8x896xf32, #tpu.memory_space<vmem>>, vector<8x768xf32>
    %c16 = arith.constant 16 : index
    %c0_10 = arith.constant 0 : index
    %11 = vector.load %arg7[%c16, %c0_10] : memref<72x768xf32, #tpu.memory_space<vmem>>, vector<8x768xf32>
    tpu.vector_store %arg7[%c16, %c0_10], %10 {strides = array<i32>} : memref<72x768xf32, #tpu.memory_space<vmem>>, vector<8x768xf32>,
    %c0_11 = arith.constant 0 : index
    %c18 = arith.constant 18 : index
    %12 = vector.load %arg1[%c0_11, %c18] : memref<8x896xf32, #tpu.memory_space<vmem>>, vector<8x768xf32>
    %c24 = arith.constant 24 : index
    %c0_12 = arith.constant 0 : index
    %13 = vector.load %arg7[%c24, %c0_12] : memref<72x768xf32, #tpu.memory_space<vmem>>, vector<8x768xf32>
    tpu.vector_store %arg7[%c24, %c0_12], %12 {strides = array<i32>} : memref<72x768xf32, #tpu.memory_space<vmem>>, vector<8x768xf32>,
    %c0_13 = arith.constant 0 : index
    %c19 = arith.constant 19 : index
    %14 = vector.load %arg1[%c0_13, %c19] : memref<8x896xf32, #tpu.memory_space<vmem>>, vector<8x768xf32>
    %c32 = arith.constant 32 : index
    %c0_14 = arith.constant 0 : index
    %15 = vector.load %arg7[%c32, %c0_14] : memref<72x768xf32, #tpu.memory_space<vmem>>, vector<8x768xf32>
    tpu.vector_store %arg7[%c32, %c0_14], %14 {strides = array<i32>} : memref<72x768xf32, #tpu.memory_space<vmem>>, vector<8x768xf32>,
    %c0_15 = arith.constant 0 : index
    %c20 = arith.constant 20 : index
    %16 = vector.load %arg1[%c0_15, %c20] : memref<8x896xf32, #tpu.memory_space<vmem>>, vector<8x768xf32>
    %c40 = arith.constant 40 : index
    %c0_16 = arith.constant 0 : index
    %17 = vector.load %arg7[%c40, %c0_16] : memref<72x768xf32, #tpu.memory_space<vmem>>, vector<8x768xf32>
    tpu.vector_store %arg7[%c40, %c0_16], %16 {strides = array<i32>} : memref<72x768xf32, #tpu.memory_space<vmem>>, vector<8x768xf32>,
    %c0_17 = arith.constant 0 : index
    %c36 = arith.constant 36 : index
    %18 = vector.load %arg1[%c0_17, %c36] : memref<8x896xf32, #tpu.memory_space<vmem>>, vector<8x768xf32>
    %c48 = arith.constant 48 : index
    %c0_18 = arith.constant 0 : index
    %19 = vector.load %arg7[%c48, %c0_18] : memref<72x768xf32, #tpu.memory_space<vmem>>, vector<8x768xf32>
    tpu.vector_store %arg7[%c48, %c0_18], %18 {strides = array<i32>} : memref<72x768xf32, #tpu.memory_space<vmem>>, vector<8x768xf32>,
    %c0_19 = arith.constant 0 : index
    %c37 = arith.constant 37 : index
    %20 = vector.load %arg1[%c0_19, %c37] : memref<8x896xf32, #tpu.memory_space<vmem>>, vector<8x768xf32>
    %c56 = arith.constant 56 : index
    %c0_20 = arith.constant 0 : index
    %21 = vector.load %arg7[%c56, %c0_20] : memref<72x768xf32, #tpu.memory_space<vmem>>, vector<8x768xf32>
    tpu.vector_store %arg7[%c56, %c0_20], %20 {strides = array<i32>} : memref<72x768xf32, #tpu.memory_space<vmem>>, vector<8x768xf32>,
    %c0_21 = arith.constant 0 : index
    %c38 = arith.constant 38 : index
    %22 = vector.load %arg1[%c0_21, %c38] : memref<8x896xf32, #tpu.memory_space<vmem>>, vector<8x768xf32>
    %c64 = arith.constant 64 : index
    %c0_22 = arith.constant 0 : index
    %23 = vector.load %arg7[%c64, %c0_22] : memref<72x768xf32, #tpu.memory_space<vmem>>, vector<8x768xf32>
    tpu.vector_store %arg7[%c64, %c0_22], %22 {strides = array<i32>} : memref<72x768xf32, #tpu.memory_space<vmem>>, vector<8x768xf32>,
    %c32_23 = arith.constant 32 : index
    %c0_24 = arith.constant 0 : index
    %24 = vector.load %arg7[%c32_23, %c0_24] : memref<72x768xf32, #tpu.memory_space<vmem>>, vector<8x768xf32>
    %c0_25 = arith.constant 0 : index
    %c0_26 = arith.constant 0 : index
    %25 = vector.load %arg4[%c0_25, %c0_26] : memref<8x72xf32, #tpu.memory_space<vmem>>, vector<8x72xf32>
    %c0_27 = arith.constant 0 : index
    %c0_28 = arith.constant 0 : index
    %26 = vector.load %arg7[%c0_27, %c0_28] : memref<72x768xf32, #tpu.memory_space<vmem>>, vector<72x768xf32>
    %cst = arith.constant dense<0.000000e+00> : vector<8x768xf32>
    %27 = tpu.matmul %25, %26, %cst {dimension_numbers = #tpu.dot_dimension_numbers<[1], [0], [0], [1], [0, 0, 1, 1], [], []>} : vector<8x72xf32>, vector<72x768xf32>, vector<8x768xf32> -> vector<8x768xf32>
    %28 = vector.broadcast %0 : vector<1x768xf32> to vector<8x768xf32>
    %29 = arith.mulf %27, %28 : vector<8x768xf32>
    %cst_29 = arith.constant dense<0.000000e+00> : vector<8xf32>
    %30 = vector.multi_reduction <add>, %29, %cst_29 [1] : vector<8x768xf32> to vector<8xf32>
    %31 = vector.shape_cast %30 : vector<8xf32> to vector<8x1xf32>
    %32 = arith.mulf %27, %29 : vector<8x768xf32>
    %cst_30 = arith.constant dense<0.000000e+00> : vector<8xf32>
    %33 = vector.multi_reduction <add>, %32, %cst_30 [1] : vector<8x768xf32> to vector<8xf32>
    %34 = vector.shape_cast %33 : vector<8xf32> to vector<8x1xf32>
    %cst_31 = arith.constant 0.001953125 : f32
    %35 = vector.broadcast %cst_31 : f32 to vector<8x1xf32>
    %36 = arith.mulf %31, %35 : vector<8x1xf32>
    %cst_32 = arith.constant 0.001953125 : f32
    %37 = vector.broadcast %cst_32 : f32 to vector<8x1xf32>
    %38 = arith.mulf %34, %37 : vector<8x1xf32>
    %39 = arith.mulf %36, %36 : vector<8x1xf32>
    %40 = arith.subf %38, %39 : vector<8x1xf32>
    %cst_33 = arith.constant 0.000000e+00 : f32
    %41 = vector.broadcast %cst_33 : f32 to vector<8x1xf32>
    %42 = arith.maximumf %40, %41 : vector<8x1xf32>
    %cst_34 = arith.constant 9.99999974E-6 : f32
    %43 = vector.broadcast %cst_34 : f32 to vector<8x1xf32>
    %44 = arith.addf %42, %43 : vector<8x1xf32>
    %45 = math.rsqrt %44 : vector<8x1xf32>
    %46 = arith.mulf %45, %2 : vector<8x1xf32>
    %47 = arith.mulf %36, %46 : vector<8x1xf32>
    %48 = arith.subf %3, %47 : vector<8x1xf32>
    %49 = vector.broadcast %46 : vector<8x1xf32> to vector<8x768xf32>
    %50 = arith.mulf %27, %49 : vector<8x768xf32>
    %51 = vector.broadcast %48 : vector<8x1xf32> to vector<8x768xf32>
    %52 = arith.addf %50, %51 : vector<8x768xf32>
    %cst_35 = arith.constant 0.000000e+00 : f32
    %53 = vector.broadcast %cst_35 : f32 to vector<8x768xf32>
    %54 = arith.maximumf %52, %53 : vector<8x768xf32>
    %55 = vector.broadcast %0 : vector<1x768xf32> to vector<8x768xf32>
    %56 = arith.mulf %54, %55 : vector<8x768xf32>
    %cst_36 = arith.constant 0.000000e+00 : f32
    %57 = vector.broadcast %cst_36 : f32 to vector<8x128xf32>
    %c0_37 = arith.constant 0 : index
    %c0_38 = arith.constant 0 : index
    %58 = vector.load %arg9[%c0_37, %c0_38] : memref<8x1024xf32, #tpu.memory_space<vmem>>, vector<8x128xf32>
    tpu.vector_store %arg9[%c0_37, %c0_38], %57 {strides = array<i32>} : memref<8x1024xf32, #tpu.memory_space<vmem>>, vector<8x128xf32>,
    %cst_39 = arith.constant 0.000000e+00 : f32
    %59 = vector.broadcast %cst_39 : f32 to vector<8x128xf32>
    %c0_40 = arith.constant 0 : index
    %c896 = arith.constant 896 : index
    %60 = vector.load %arg9[%c0_40, %c896] : memref<8x1024xf32, #tpu.memory_space<vmem>>, vector<8x128xf32>
    tpu.vector_store %arg9[%c0_40, %c896], %59 {strides = array<i32>} : memref<8x1024xf32, #tpu.memory_space<vmem>>, vector<8x128xf32>,
    %c0_41 = arith.constant 0 : index
    %c128 = arith.constant 128 : index
    %61 = vector.load %arg9[%c0_41, %c128] : memref<8x1024xf32, #tpu.memory_space<vmem>>, vector<8x768xf32>
    tpu.vector_store %arg9[%c0_41, %c128], %56 {strides = array<i32>} : memref<8x1024xf32, #tpu.memory_space<vmem>>, vector<8x768xf32>,
    %c0_42 = arith.constant 0 : index
    %c109 = arith.constant 109 : index
    %62 = vector.load %arg9[%c0_42, %c109] : memref<8x1024xf32, #tpu.memory_space<vmem>>, vector<8x768xf32>
    %c0_43 = arith.constant 0 : index
    %c0_44 = arith.constant 0 : index
    %63 = vector.load %arg8[%c0_43, %c0_44] : memref<80x768xf32, #tpu.memory_space<vmem>>, vector<8x768xf32>
    tpu.vector_store %arg8[%c0_43, %c0_44], %62 {strides = array<i32>} : memref<80x768xf32, #tpu.memory_space<vmem>>, vector<8x768xf32>,
    %c0_45 = arith.constant 0 : index
    %c110 = arith.constant 110 : index
    %64 = vector.load %arg9[%c0_45, %c110] : memref<8x1024xf32, #tpu.memory_space<vmem>>, vector<8x768xf32>
    %c8_46 = arith.constant 8 : index
    %c0_47 = arith.constant 0 : index
    %65 = vector.load %arg8[%c8_46, %c0_47] : memref<80x768xf32, #tpu.memory_space<vmem>>, vector<8x768xf32>
    tpu.vector_store %arg8[%c8_46, %c0_47], %64 {strides = array<i32>} : memref<80x768xf32, #tpu.memory_space<vmem>>, vector<8x768xf32>,
    %c0_48 = arith.constant 0 : index
    %c111 = arith.constant 111 : index
    %66 = vector.load %arg9[%c0_48, %c111] : memref<8x1024xf32, #tpu.memory_space<vmem>>, vector<8x768xf32>
    %c16_49 = arith.constant 16 : index
    %c0_50 = arith.constant 0 : index
    %67 = vector.load %arg8[%c16_49, %c0_50] : memref<80x768xf32, #tpu.memory_space<vmem>>, vector<8x768xf32>
    tpu.vector_store %arg8[%c16_49, %c0_50], %66 {strides = array<i32>} : memref<80x768xf32, #tpu.memory_space<vmem>>, vector<8x768xf32>,
    %c0_51 = arith.constant 0 : index
    %c127 = arith.constant 127 : index
    %68 = vector.load %arg9[%c0_51, %c127] : memref<8x1024xf32, #tpu.memory_space<vmem>>, vector<8x768xf32>
    %c24_52 = arith.constant 24 : index
    %c0_53 = arith.constant 0 : index
    %69 = vector.load %arg8[%c24_52, %c0_53] : memref<80x768xf32, #tpu.memory_space<vmem>>, vector<8x768xf32>
    tpu.vector_store %arg8[%c24_52, %c0_53], %68 {strides = array<i32>} : memref<80x768xf32, #tpu.memory_space<vmem>>, vector<8x768xf32>,
    %c0_54 = arith.constant 0 : index
    %c128_55 = arith.constant 128 : index
    %70 = vector.load %arg9[%c0_54, %c128_55] : memref<8x1024xf32, #tpu.memory_space<vmem>>, vector<8x768xf32>
    %c32_56 = arith.constant 32 : index
    %c0_57 = arith.constant 0 : index
    %71 = vector.load %arg8[%c32_56, %c0_57] : memref<80x768xf32, #tpu.memory_space<vmem>>, vector<8x768xf32>
    tpu.vector_store %arg8[%c32_56, %c0_57], %70 {strides = array<i32>} : memref<80x768xf32, #tpu.memory_space<vmem>>, vector<8x768xf32>,
    %c0_58 = arith.constant 0 : index
    %c129 = arith.constant 129 : index
    %72 = vector.load %arg9[%c0_58, %c129] : memref<8x1024xf32, #tpu.memory_space<vmem>>, vector<8x768xf32>
    %c40_59 = arith.constant 40 : index
    %c0_60 = arith.constant 0 : index
    %73 = vector.load %arg8[%c40_59, %c0_60] : memref<80x768xf32, #tpu.memory_space<vmem>>, vector<8x768xf32>
    tpu.vector_store %arg8[%c40_59, %c0_60], %72 {strides = array<i32>} : memref<80x768xf32, #tpu.memory_space<vmem>>, vector<8x768xf32>,
    %c0_61 = arith.constant 0 : index
    %c145 = arith.constant 145 : index
    %74 = vector.load %arg9[%c0_61, %c145] : memref<8x1024xf32, #tpu.memory_space<vmem>>, vector<8x768xf32>
    %c48_62 = arith.constant 48 : index
    %c0_63 = arith.constant 0 : index
    %75 = vector.load %arg8[%c48_62, %c0_63] : memref<80x768xf32, #tpu.memory_space<vmem>>, vector<8x768xf32>
    tpu.vector_store %arg8[%c48_62, %c0_63], %74 {strides = array<i32>} : memref<80x768xf32, #tpu.memory_space<vmem>>, vector<8x768xf32>,
    %c0_64 = arith.constant 0 : index
    %c146 = arith.constant 146 : index
    %76 = vector.load %arg9[%c0_64, %c146] : memref<8x1024xf32, #tpu.memory_space<vmem>>, vector<8x768xf32>
    %c56_65 = arith.constant 56 : index
    %c0_66 = arith.constant 0 : index
    %77 = vector.load %arg8[%c56_65, %c0_66] : memref<80x768xf32, #tpu.memory_space<vmem>>, vector<8x768xf32>
    tpu.vector_store %arg8[%c56_65, %c0_66], %76 {strides = array<i32>} : memref<80x768xf32, #tpu.memory_space<vmem>>, vector<8x768xf32>,
    %c0_67 = arith.constant 0 : index
    %c147 = arith.constant 147 : index
    %78 = vector.load %arg9[%c0_67, %c147] : memref<8x1024xf32, #tpu.memory_space<vmem>>, vector<8x768xf32>
    %c64_68 = arith.constant 64 : index
    %c0_69 = arith.constant 0 : index
    %79 = vector.load %arg8[%c64_68, %c0_69] : memref<80x768xf32, #tpu.memory_space<vmem>>, vector<8x768xf32>
    tpu.vector_store %arg8[%c64_68, %c0_69], %78 {strides = array<i32>} : memref<80x768xf32, #tpu.memory_space<vmem>>, vector<8x768xf32>,
    %c72 = arith.constant 72 : index
    %c0_70 = arith.constant 0 : index
    %80 = vector.load %arg8[%c72, %c0_70] : memref<80x768xf32, #tpu.memory_space<vmem>>, vector<8x768xf32>
    tpu.vector_store %arg8[%c72, %c0_70], %24 {strides = array<i32>} : memref<80x768xf32, #tpu.memory_space<vmem>>, vector<8x768xf32>,
    %c0_71 = arith.constant 0 : index
    %c0_72 = arith.constant 0 : index
    %81 = vector.load %arg5[%c0_71, %c0_72] : memref<8x80xf32, #tpu.memory_space<vmem>>, vector<8x80xf32>
    %c0_73 = arith.constant 0 : index
    %c0_74 = arith.constant 0 : index
    %82 = vector.load %arg8[%c0_73, %c0_74] : memref<80x768xf32, #tpu.memory_space<vmem>>, vector<80x768xf32>
    %cst_75 = arith.constant dense<0.000000e+00> : vector<8x768xf32>
    %83 = tpu.matmul %81, %82, %cst_75 {dimension_numbers = #tpu.dot_dimension_numbers<[1], [0], [0], [1], [0, 0, 1, 1], [], []>} : vector<8x80xf32>, vector<80x768xf32>, vector<8x768xf32> -> vector<8x768xf32>
    %84 = vector.broadcast %0 : vector<1x768xf32> to vector<8x768xf32>
    %85 = arith.mulf %83, %84 : vector<8x768xf32>
    %cst_76 = arith.constant dense<0.000000e+00> : vector<8xf32>
    %86 = vector.multi_reduction <add>, %85, %cst_76 [1] : vector<8x768xf32> to vector<8xf32>
    %87 = vector.shape_cast %86 : vector<8xf32> to vector<8x1xf32>
    %88 = arith.mulf %83, %85 : vector<8x768xf32>
    %cst_77 = arith.constant dense<0.000000e+00> : vector<8xf32>
    %89 = vector.multi_reduction <add>, %88, %cst_77 [1] : vector<8x768xf32> to vector<8xf32>
    %90 = vector.shape_cast %89 : vector<8xf32> to vector<8x1xf32>
    %cst_78 = arith.constant 0.001953125 : f32
    %91 = vector.broadcast %cst_78 : f32 to vector<8x1xf32>
    %92 = arith.mulf %87, %91 : vector<8x1xf32>
    %cst_79 = arith.constant 0.001953125 : f32
    %93 = vector.broadcast %cst_79 : f32 to vector<8x1xf32>
    %94 = arith.mulf %90, %93 : vector<8x1xf32>
    %95 = arith.mulf %92, %92 : vector<8x1xf32>
    %96 = arith.subf %94, %95 : vector<8x1xf32>
    %cst_80 = arith.constant 0.000000e+00 : f32
    %97 = vector.broadcast %cst_80 : f32 to vector<8x1xf32>
    %98 = arith.maximumf %96, %97 : vector<8x1xf32>
    %cst_81 = arith.constant 9.99999974E-6 : f32
    %99 = vector.broadcast %cst_81 : f32 to vector<8x1xf32>
    %100 = arith.addf %98, %99 : vector<8x1xf32>
    %101 = math.rsqrt %100 : vector<8x1xf32>
    %102 = arith.mulf %101, %4 : vector<8x1xf32>
    %103 = arith.mulf %92, %102 : vector<8x1xf32>
    %104 = arith.subf %5, %103 : vector<8x1xf32>
    %105 = vector.broadcast %102 : vector<8x1xf32> to vector<8x768xf32>
    %106 = arith.mulf %83, %105 : vector<8x768xf32>
    %107 = vector.broadcast %104 : vector<8x1xf32> to vector<8x768xf32>
    %108 = arith.addf %106, %107 : vector<8x768xf32>
    %cst_82 = arith.constant 0.000000e+00 : f32
    %109 = vector.broadcast %cst_82 : f32 to vector<8x768xf32>
    %110 = arith.maximumf %108, %109 : vector<8x768xf32>
    %c0_83 = arith.constant 0 : index
    %c0_84 = arith.constant 0 : index
    %111 = vector.load %arg6[%c0_83, %c0_84] : memref<8x768xf32, #tpu.memory_space<vmem>>, vector<8x768xf32>
    tpu.vector_store %arg6[%c0_83, %c0_84], %110 {strides = array<i32>} : memref<8x768xf32, #tpu.memory_space<vmem>>, vector<8x768xf32>,
    return
  }
  func.func @transform_0(%arg0: i32) -> (i32, i32) {
    %c0_i32 = arith.constant 0 : i32
    %c0_i32_0 = arith.constant 0 : i32
    %c0_i32_1 = arith.constant 0 : i32
    return %c0_i32, %c0_i32_0 : i32, i32
  }
  func.func @transform_1(%arg0: i32) -> (i32, i32) {
    %c0_i32 = arith.constant 0 : i32
    %c0_i32_0 = arith.constant 0 : i32
    %c0_i32_1 = arith.constant 0 : i32
    return %c0_i32, %c0_i32_0 : i32, i32
  }
  func.func @transform_2(%arg0: i32) -> (i32, i32) {
    %c0_i32 = arith.constant 0 : i32
    %c0_i32_0 = arith.constant 0 : i32
    %c0_i32_1 = arith.constant 0 : i32
    return %c0_i32, %c0_i32_0 : i32, i32
  }
  func.func @transform_3(%arg0: i32) -> (i32, i32) {
    %c0_i32 = arith.constant 0 : i32
    %c0_i32_0 = arith.constant 0 : i32
    %c0_i32_1 = arith.constant 0 : i32
    return %c0_i32, %c0_i32_0 : i32, i32
  }
  func.func @transform_4(%arg0: i32) -> (i32, i32) {
    %c0_i32 = arith.constant 0 : i32
    %c0_i32_0 = arith.constant 0 : i32
    %c0_i32_1 = arith.constant 0 : i32
    return %c0_i32, %c0_i32_0 : i32, i32
  }
  func.func @transform_5(%arg0: i32) -> (i32, i32) {
    %c0_i32 = arith.constant 0 : i32
    %c0_i32_0 = arith.constant 0 : i32
    %c0_i32_1 = arith.constant 0 : i32
    return %c0_i32, %c0_i32_0 : i32, i32
  }
}

</mosaic_0001>

<llo_original>
// kernel: resid_conv_block_forward.1
$region0: #{resid_conv_block_forward.1}
  #allocation0 [shape = 'u32[]', space=smem, size = 0x4, offset = 0x4, fixed_abs, tag = 'smem constant byte address 0x4 - core index']
  #allocation1 [shape = 'u32[144,128]{1,0:T(1,128)}', space=vmem, size = 0x12000, scoped, tag = 'internal scratch']
  #allocation2 [shape = 'f32[72,768]{1,0:T(8,128)}', space=vmem, size = 0x36000, scoped, tag = 'scratch operand']
  #allocation3 [shape = 'f32[80,768]{1,0:T(8,128)}', space=vmem, size = 0x3c000, scoped, tag = 'scratch operand']
  #allocation4 [shape = 'f32[8,1024]{1,0:T(8,128)}', space=vmem, size = 0x8000, scoped, tag = 'scratch operand']
  %s0 = inlined_call_operand.vmem [shape: f32[8,896], index: 0, kind: input, shape index: {}]
  %s1 = inlined_call_operand.vmem [shape: f32[1,768], index: 1, kind: input, shape index: {}]
  %s2 = inlined_call_operand.vmem [shape: f32[8,4], index: 2, kind: input, shape index: {}]
  %s3 = inlined_call_operand.vmem [shape: f32[8,72], index: 3, kind: input, shape index: {}]
  %s4 = inlined_call_operand.vmem [shape: f32[8,80], index: 4, kind: input, shape index: {}]
  %s5 = inlined_call_operand.vmem [shape: f32[8,768], index: 5, kind: output, shape index: {}]
  %s6 = sld [smem:[#allocation0]]
  $region30: #{resid_conv_block_forward.1} parent=0
    _
  %s8 = ssub.s32 1, %s6
  %s9 = scalar_select 0, %s8, %s6
  // Predicated region
  $region2: #{resid_conv_block_forward.1} parent=0 // pred_check
    _
  $region3: #{resid_conv_block_forward.1} parent=0 // pred_check_branch
    %11 = sbr.rel (0) target = $region5
  $region4: #{resid_conv_block_forward.1} parent=0 // pred_region
    _
  $region5: #{resid_conv_block_forward.1} parent=0 // pred_fallthru
    _
  // Predicated region
  $region6: #{resid_conv_block_forward.1} parent=0 // pred_check
    _
  $region7: #{resid_conv_block_forward.1} parent=0 // pred_check_branch
    %13 = sbr.rel (0) target = $region9
  $region8: #{resid_conv_block_forward.1} parent=0 // pred_region
    _
  $region9: #{resid_conv_block_forward.1} parent=0 // pred_fallthru
    _
  // Predicated region
  $region10: #{resid_conv_block_forward.1} parent=0 // pred_check
    _
  $region11: #{resid_conv_block_forward.1} parent=0 // pred_check_branch
    %15 = sbr.rel (0) target = $region13
  $region12: #{resid_conv_block_forward.1} parent=0 // pred_region
    _
  $region13: #{resid_conv_block_forward.1} parent=0 // pred_fallthru
    _
  // Predicated region
  $region14: #{resid_conv_block_forward.1} parent=0 // pred_check
    _
  $region15: #{resid_conv_block_forward.1} parent=0 // pred_check_branch
    %17 = sbr.rel (0) target = $region17
  $region16: #{resid_conv_block_forward.1} parent=0 // pred_region
    _
  $region17: #{resid_conv_block_forward.1} parent=0 // pred_fallthru
    _
  // Predicated region
  $region18: #{resid_conv_block_forward.1} parent=0 // pred_check
    _
  $region19: #{resid_conv_block_forward.1} parent=0 // pred_check_branch
    %19 = sbr.rel (0) target = $region21
  $region20: #{resid_conv_block_forward.1} parent=0 // pred_region
    _
  $region21: #{resid_conv_block_forward.1} parent=0 // pred_fallthru
    _
  %v20 = vld [vmem:[%s1] sm:$0x3f]
  %v21 = vld [vmem:[%s2] sm:$0xff]
  %v22 = vld [vmem:[%s0] sm:$0xff]
  %v23 = vld [vmem:[%s0 + $0x8] sm:$0xff]
  %v24 = vld [vmem:[%s0 + $0x10] sm:$0xff]
  %v25 = vld [vmem:[%s0 + $0x18] sm:$0xff]
  %v26 = vld [vmem:[%s0 + $0x20] sm:$0xff]
  %v27 = vld [vmem:[%s0 + $0x28] sm:$0xff]
  %28 = vst [vmem:[#allocation2] sm:$0xff] %v22
  %29 = vst [vmem:[#allocation2 + $0x8] sm:$0xff] %v23
  %30 = vst [vmem:[#allocation2 + $0x10] sm:$0xff] %v24
  %31 = vst [vmem:[#allocation2 + $0x18] sm:$0xff] %v25
  %32 = vst [vmem:[#allocation2 + $0x20] sm:$0xff] %v26
  %33 = vst [vmem:[#allocation2 + $0x28] sm:$0xff] %v27
  %v34 = vld [vmem:[%s0] sm:$0xff]
  %v35 = vld [vmem:[%s0 + $0x8] sm:$0xff]
  %v36 = vld [vmem:[%s0 + $0x10] sm:$0xff]
  %v37 = vld [vmem:[%s0 + $0x18] sm:$0xff]
  %v38 = vld [vmem:[%s0 + $0x20] sm:$0xff]
  %v39 = vld [vmem:[%s0 + $0x28] sm:$0xff]
  %v40 = vld [vmem:[%s0 + $0x30] sm:$0xff]
  %48 = vrot.lane.b32.xlu0 %v34, 127
  %v49 = vpop.permute.xlu0 %48
  %50 = vrot.lane.b32.xlu0 %v35, 127
  %v51 = vpop.permute.xlu0 %50
  %52 = vrot.lane.b32.xlu0 %v36, 127
  %v53 = vpop.permute.xlu0 %52
  %54 = vrot.lane.b32.xlu0 %v37, 127
  %v55 = vpop.permute.xlu0 %54
  %56 = vrot.lane.b32.xlu0 %v38, 127
  %v57 = vpop.permute.xlu0 %56
  %58 = vrot.lane.b32.xlu0 %v39, 127
  %v59 = vpop.permute.xlu0 %58
  %60 = vrot.lane.b32.xlu0 %v40, 127
  %v61 = vpop.permute.xlu0 %60
  %vm62 = vcmask 1039360
  %v63 = vsel %vm62, %v49, %v51
  %v64 = vsel %vm62, %v51, %v53
  %v65 = vsel %vm62, %v53, %v55
  %v66 = vsel %vm62, %v55, %v57
  %v67 = vsel %vm62, %v57, %v59
  %v68 = vsel %vm62, %v59, %v61
  %75 = vst [vmem:[#allocation2 + $0x30] sm:$0xff] %v63
  %76 = vst [vmem:[#allocation2 + $0x38] sm:$0xff] %v64
  %77 = vst [vmem:[#allocation2 + $0x40] sm:$0xff] %v65
  %78 = vst [vmem:[#allocation2 + $0x48] sm:$0xff] %v66
  %79 = vst [vmem:[#allocation2 + $0x50] sm:$0xff] %v67
  %80 = vst [vmem:[#allocation2 + $0x58] sm:$0xff] %v68
  %v81 = vld [vmem:[%s0] sm:$0xff]
  %v82 = vld [vmem:[%s0 + $0x8] sm:$0xff]
  %v83 = vld [vmem:[%s0 + $0x10] sm:$0xff]
  %v84 = vld [vmem:[%s0 + $0x18] sm:$0xff]
  %v85 = vld [vmem:[%s0 + $0x20] sm:$0xff]
  %v86 = vld [vmem:[%s0 + $0x28] sm:$0xff]
  %v87 = vld [vmem:[%s0 + $0x30] sm:$0xff]
  %95 = vrot.lane.b32.xlu0 %v81, 126
  %v96 = vpop.permute.xlu0 %95
  %97 = vrot.lane.b32.xlu0 %v82, 126
  %v98 = vpop.permute.xlu0 %97
  %99 = vrot.lane.b32.xlu0 %v83, 126
  %v100 = vpop.permute.xlu0 %99
  %101 = vrot.lane.b32.xlu0 %v84, 126
  %v102 = vpop.permute.xlu0 %101
  %103 = vrot.lane.b32.xlu0 %v85, 126
  %v104 = vpop.permute.xlu0 %103
  %105 = vrot.lane.b32.xlu0 %v86, 126
  %v106 = vpop.permute.xlu0 %105
  %107 = vrot.lane.b32.xlu0 %v87, 126
  %v108 = vpop.permute.xlu0 %107
  %vm109 = vcmask 1031168
  %v110 = vsel %vm109, %v96, %v98
  %v111 = vsel %vm109, %v98, %v100
  %v112 = vsel %vm109, %v100, %v102
  %v113 = vsel %vm109, %v102, %v104
  %v114 = vsel %vm109, %v104, %v106
  %v115 = vsel %vm109, %v106, %v108
  %122 = vst [vmem:[#allocation2 + $0x60] sm:$0xff] %v110
  %123 = vst [vmem:[#allocation2 + $0x68] sm:$0xff] %v111
  %124 = vst [vmem:[#allocation2 + $0x70] sm:$0xff] %v112
  %125 = vst [vmem:[#allocation2 + $0x78] sm:$0xff] %v113
  %126 = vst [vmem:[#allocation2 + $0x80] sm:$0xff] %v114
  %127 = vst [vmem:[#allocation2 + $0x88] sm:$0xff] %v115
  %v128 = vld [vmem:[%s0] sm:$0xff]
  %v129 = vld [vmem:[%s0 + $0x8] sm:$0xff]
  %v130 = vld [vmem:[%s0 + $0x10] sm:$0xff]
  %v131 = vld [vmem:[%s0 + $0x18] sm:$0xff]
  %v132 = vld [vmem:[%s0 + $0x20] sm:$0xff]
  %v133 = vld [vmem:[%s0 + $0x28] sm:$0xff]
  %v134 = vld [vmem:[%s0 + $0x30] sm:$0xff]
  %142 = vrot.lane.b32.xlu0 %v128, 110
  %v143 = vpop.permute.xlu0 %142
  %144 = vrot.lane.b32.xlu0 %v129, 110
  %v145 = vpop.permute.xlu0 %144
  %146 = vrot.lane.b32.xlu0 %v130, 110
  %v147 = vpop.permute.xlu0 %146
  %148 = vrot.lane.b32.xlu0 %v131, 110
  %v149 = vpop.permute.xlu0 %148
  %150 = vrot.lane.b32.xlu0 %v132, 110
  %v151 = vpop.permute.xlu0 %150
  %152 = vrot.lane.b32.xlu0 %v133, 110
  %v153 = vpop.permute.xlu0 %152
  %154 = vrot.lane.b32.xlu0 %v134, 110
  %v155 = vpop.permute.xlu0 %154
  %vm156 = vcmask 900096
  %v157 = vsel %vm156, %v143, %v145
  %v158 = vsel %vm156, %v145, %v147
  %v159 = vsel %vm156, %v147, %v149
  %v160 = vsel %vm156, %v149, %v151
  %v161 = vsel %vm156, %v151, %v153
  %v162 = vsel %vm156, %v153, %v155
  %169 = vst [vmem:[#allocation2 + $0x90] sm:$0xff] %v157
  %170 = vst [vmem:[#allocation2 + $0x98] sm:$0xff] %v158
  %171 = vst [vmem:[#allocation2 + $0xa0] sm:$0xff] %v159
  %172 = vst [vmem:[#allocation2 + $0xa8] sm:$0xff] %v160
  %173 = vst [vmem:[#allocation2 + $0xb0] sm:$0xff] %v161
  %174 = vst [vmem:[#allocation2 + $0xb8] sm:$0xff] %v162
  %v175 = vld [vmem:[%s0] sm:$0xff]
  %v176 = vld [vmem:[%s0 + $0x8] sm:$0xff]
  %v177 = vld [vmem:[%s0 + $0x10] sm:$0xff]
  %v178 = vld [vmem:[%s0 + $0x18] sm:$0xff]
  %v179 = vld [vmem:[%s0 + $0x20] sm:$0xff]
  %v180 = vld [vmem:[%s0 + $0x28] sm:$0xff]
  %v181 = vld [vmem:[%s0 + $0x30] sm:$0xff]
  %189 = vrot.lane.b32.xlu0 %v175, 109
  %v190 = vpop.permute.xlu0 %189
  %191 = vrot.lane.b32.xlu0 %v176, 109
  %v192 = vpop.permute.xlu0 %191
  %193 = vrot.lane.b32.xlu0 %v177, 109
  %v194 = vpop.permute.xlu0 %193
  %195 = vrot.lane.b32.xlu0 %v178, 109
  %v196 = vpop.permute.xlu0 %195
  %197 = vrot.lane.b32.xlu0 %v179, 109
  %v198 = vpop.permute.xlu0 %197
  %199 = vrot.lane.b32.xlu0 %v180, 109
  %v200 = vpop.permute.xlu0 %199
  %201 = vrot.lane.b32.xlu0 %v181, 109
  %v202 = vpop.permute.xlu0 %201
  %vm203 = vcmask 891904
  %v204 = vsel %vm203, %v190, %v192
  %v205 = vsel %vm203, %v192, %v194
  %v206 = vsel %vm203, %v194, %v196
  %v207 = vsel %vm203, %v196, %v198
  %v208 = vsel %vm203, %v198, %v200
  %v209 = vsel %vm203, %v200, %v202
  %216 = vst [vmem:[#allocation2 + $0xc0] sm:$0xff] %v204
  %217 = vst [vmem:[#allocation2 + $0xc8] sm:$0xff] %v205
  %218 = vst [vmem:[#allocation2 + $0xd0] sm:$0xff] %v206
  %219 = vst [vmem:[#allocation2 + $0xd8] sm:$0xff] %v207
  %220 = vst [vmem:[#allocation2 + $0xe0] sm:$0xff] %v208
  %221 = vst [vmem:[#allocation2 + $0xe8] sm:$0xff] %v209
  %v222 = vld [vmem:[%s0] sm:$0xff]
  %v223 = vld [vmem:[%s0 + $0x8] sm:$0xff]
  %v224 = vld [vmem:[%s0 + $0x10] sm:$0xff]
  %v225 = vld [vmem:[%s0 + $0x18] sm:$0xff]
  %v226 = vld [vmem:[%s0 + $0x20] sm:$0xff]
  %v227 = vld [vmem:[%s0 + $0x28] sm:$0xff]
  %v228 = vld [vmem:[%s0 + $0x30] sm:$0xff]
  %236 = vrot.lane.b32.xlu0 %v222, 108
  %v237 = vpop.permute.xlu0 %236
  %238 = vrot.lane.b32.xlu0 %v223, 108
  %v239 = vpop.permute.xlu0 %238
  %240 = vrot.lane.b32.xlu0 %v224, 108
  %v241 = vpop.permute.xlu0 %240
  %242 = vrot.lane.b32.xlu0 %v225, 108
  %v243 = vpop.permute.xlu0 %242
  %244 = vrot.lane.b32.xlu0 %v226, 108
  %v245 = vpop.permute.xlu0 %244
  %246 = vrot.lane.b32.xlu0 %v227, 108
  %v247 = vpop.permute.xlu0 %246
  %248 = vrot.lane.b32.xlu0 %v228, 108
  %v249 = vpop.permute.xlu0 %248
  %vm250 = vcmask 883712
  %v251 = vsel %vm250, %v237, %v239
  %v252 = vsel %vm250, %v239, %v241
  %v253 = vsel %vm250, %v241, %v243
  %v254 = vsel %vm250, %v243, %v245
  %v255 = vsel %vm250, %v245, %v247
  %v256 = vsel %vm250, %v247, %v249
  %263 = vst [vmem:[#allocation2 + $0xf0] sm:$0xff] %v251
  %264 = vst [vmem:[#allocation2 + $0xf8] sm:$0xff] %v252
  %265 = vst [vmem:[#allocation2 + $0x100] sm:$0xff] %v253
  %266 = vst [vmem:[#allocation2 + $0x108] sm:$0xff] %v254
  %267 = vst [vmem:[#allocation2 + $0x110] sm:$0xff] %v255
  %268 = vst [vmem:[#allocation2 + $0x118] sm:$0xff] %v256
  %v269 = vld [vmem:[%s0] sm:$0xff]
  %v270 = vld [vmem:[%s0 + $0x8] sm:$0xff]
  %v271 = vld [vmem:[%s0 + $0x10] sm:$0xff]
  %v272 = vld [vmem:[%s0 + $0x18] sm:$0xff]
  %v273 = vld [vmem:[%s0 + $0x20] sm:$0xff]
  %v274 = vld [vmem:[%s0 + $0x28] sm:$0xff]
  %v275 = vld [vmem:[%s0 + $0x30] sm:$0xff]
  %283 = vrot.lane.b32.xlu0 %v269, 92
  %v284 = vpop.permute.xlu0 %283
  %285 = vrot.lane.b32.xlu0 %v270, 92
  %v286 = vpop.permute.xlu0 %285
  %287 = vrot.lane.b32.xlu0 %v271, 92
  %v288 = vpop.permute.xlu0 %287
  %289 = vrot.lane.b32.xlu0 %v272, 92
  %v290 = vpop.permute.xlu0 %289
  %291 = vrot.lane.b32.xlu0 %v273, 92
  %v292 = vpop.permute.xlu0 %291
  %293 = vrot.lane.b32.xlu0 %v274, 92
  %v294 = vpop.permute.xlu0 %293
  %295 = vrot.lane.b32.xlu0 %v275, 92
  %v296 = vpop.permute.xlu0 %295
  %vm297 = vcmask 752640
  %v298 = vsel %vm297, %v284, %v286
  %v299 = vsel %vm297, %v286, %v288
  %v300 = vsel %vm297, %v288, %v290
  %v301 = vsel %vm297, %v290, %v292
  %v302 = vsel %vm297, %v292, %v294
  %v303 = vsel %vm297, %v294, %v296
  %310 = vst [vmem:[#allocation2 + $0x120] sm:$0xff] %v298
  %311 = vst [vmem:[#allocation2 + $0x128] sm:$0xff] %v299
  %312 = vst [vmem:[#allocation2 + $0x130] sm:$0xff] %v300
  %313 = vst [vmem:[#allocation2 + $0x138] sm:$0xff] %v301
  %314 = vst [vmem:[#allocation2 + $0x140] sm:$0xff] %v302
  %315 = vst [vmem:[#allocation2 + $0x148] sm:$0xff] %v303
  %v316 = vld [vmem:[%s0] sm:$0xff]
  %v317 = vld [vmem:[%s0 + $0x8] sm:$0xff]
  %v318 = vld [vmem:[%s0 + $0x10] sm:$0xff]
  %v319 = vld [vmem:[%s0 + $0x18] sm:$0xff]
  %v320 = vld [vmem:[%s0 + $0x20] sm:$0xff]
  %v321 = vld [vmem:[%s0 + $0x28] sm:$0xff]
  %v322 = vld [vmem:[%s0 + $0x30] sm:$0xff]
  %330 = vrot.lane.b32.xlu0 %v316, 91
  %v331 = vpop.permute.xlu0 %330
  %332 = vrot.lane.b32.xlu0 %v317, 91
  %v333 = vpop.permute.xlu0 %332
  %334 = vrot.lane.b32.xlu0 %v318, 91
  %v335 = vpop.permute.xlu0 %334
  %336 = vrot.lane.b32.xlu0 %v319, 91
  %v337 = vpop.permute.xlu0 %336
  %338 = vrot.lane.b32.xlu0 %v320, 91
  %v339 = vpop.permute.xlu0 %338
  %340 = vrot.lane.b32.xlu0 %v321, 91
  %v341 = vpop.permute.xlu0 %340
  %342 = vrot.lane.b32.xlu0 %v322, 91
  %v343 = vpop.permute.xlu0 %342
  %vm344 = vcmask 744448
  %v345 = vsel %vm344, %v331, %v333
  %v346 = vsel %vm344, %v333, %v335
  %v347 = vsel %vm344, %v335, %v337
  %v348 = vsel %vm344, %v337, %v339
  %v349 = vsel %vm344, %v339, %v341
  %v350 = vsel %vm344, %v341, %v343
  %357 = vst [vmem:[#allocation2 + $0x150] sm:$0xff] %v345
  %358 = vst [vmem:[#allocation2 + $0x158] sm:$0xff] %v346
  %359 = vst [vmem:[#allocation2 + $0x160] sm:$0xff] %v347
  %360 = vst [vmem:[#allocation2 + $0x168] sm:$0xff] %v348
  %361 = vst [vmem:[#allocation2 + $0x170] sm:$0xff] %v349
  %362 = vst [vmem:[#allocation2 + $0x178] sm:$0xff] %v350
  %v363 = vld [vmem:[%s0] sm:$0xff]
  %v364 = vld [vmem:[%s0 + $0x8] sm:$0xff]
  %v365 = vld [vmem:[%s0 + $0x10] sm:$0xff]
  %v366 = vld [vmem:[%s0 + $0x18] sm:$0xff]
  %v367 = vld [vmem:[%s0 + $0x20] sm:$0xff]
  %v368 = vld [vmem:[%s0 + $0x28] sm:$0xff]
  %v369 = vld [vmem:[%s0 + $0x30] sm:$0xff]
  %377 = vrot.lane.b32.xlu0 %v363, 90
  %v378 = vpop.permute.xlu0 %377
  %379 = vrot.lane.b32.xlu0 %v364, 90
  %v380 = vpop.permute.xlu0 %379
  %381 = vrot.lane.b32.xlu0 %v365, 90
  %v382 = vpop.permute.xlu0 %381
  %383 = vrot.lane.b32.xlu0 %v366, 90
  %v384 = vpop.permute.xlu0 %383
  %385 = vrot.lane.b32.xlu0 %v367, 90
  %v386 = vpop.permute.xlu0 %385
  %387 = vrot.lane.b32.xlu0 %v368, 90
  %v388 = vpop.permute.xlu0 %387
  %389 = vrot.lane.b32.xlu0 %v369, 90
  %v390 = vpop.permute.xlu0 %389
  %vm391 = vcmask 736256
  %v392 = vsel %vm391, %v378, %v380
  %v393 = vsel %vm391, %v380, %v382
  %v394 = vsel %vm391, %v382, %v384
  %v395 = vsel %vm391, %v384, %v386
  %v396 = vsel %vm391, %v386, %v388
  %v397 = vsel %vm391, %v388, %v390
  %404 = vst [vmem:[#allocation2 + $0x180] sm:$0xff] %v392
  %405 = vst [vmem:[#allocation2 + $0x188] sm:$0xff] %v393
  %406 = vst [vmem:[#allocation2 + $0x190] sm:$0xff] %v394
  %407 = vst [vmem:[#allocation2 + $0x198] sm:$0xff] %v395
  %408 = vst [vmem:[#allocation2 + $0x1a0] sm:$0xff] %v396
  %409 = vst [vmem:[#allocation2 + $0x1a8] sm:$0xff] %v397
  %v410 = vld [vmem:[#allocation2 + $0xc0] sm:$0xff]
  %v411 = vld [vmem:[#allocation2 + $0xc8] sm:$0xff]
  %v412 = vld [vmem:[#allocation2 + $0xd0] sm:$0xff]
  %v413 = vld [vmem:[#allocation2 + $0xd8] sm:$0xff]
  %v414 = vld [vmem:[#allocation2 + $0xe0] sm:$0xff]
  %v415 = vld [vmem:[#allocation2 + $0xe8] sm:$0xff]
  %v416 = vld [vmem:[%s3] sm:$0xff]
  %v417 = vld [vmem:[#allocation2] sm:$0xff]
  %v418 = vld [vmem:[#allocation2 + $0x8] sm:$0xff]
  %v419 = vld [vmem:[#allocation2 + $0x10] sm:$0xff]
  %v420 = vld [vmem:[#allocation2 + $0x18] sm:$0xff]
  %v421 = vld [vmem:[#allocation2 + $0x20] sm:$0xff]
  %v422 = vld [vmem:[#allocation2 + $0x28] sm:$0xff]
  %v423 = vld [vmem:[#allocation2 + $0x30] sm:$0xff]
  %v424 = vld [vmem:[#allocation2 + $0x38] sm:$0xff]
  %v425 = vld [vmem:[#allocation2 + $0x40] sm:$0xff]
  %v426 = vld [vmem:[#allocation2 + $0x48] sm:$0xff]
  %v427 = vld [vmem:[#allocation2 + $0x50] sm:$0xff]
  %v428 = vld [vmem:[#allocation2 + $0x58] sm:$0xff]
  %v429 = vld [vmem:[#allocation2 + $0x60] sm:$0xff]
  %v430 = vld [vmem:[#allocation2 + $0x68] sm:$0xff]
  %v431 = vld [vmem:[#allocation2 + $0x70] sm:$0xff]
  %v432 = vld [vmem:[#allocation2 + $0x78] sm:$0xff]
  %v433 = vld [vmem:[#allocation2 + $0x80] sm:$0xff]
  %v434 = vld [vmem:[#allocation2 + $0x88] sm:$0xff]
  %v435 = vld [vmem:[#allocation2 + $0x90] sm:$0xff]
  %v436 = vld [vmem:[#allocation2 + $0x98] sm:$0xff]
  %v437 = vld [vmem:[#allocation2 + $0xa0] sm:$0xff]
  %v438 = vld [vmem:[#allocation2 + $0xa8] sm:$0xff]
  %v439 = vld [vmem:[#allocation2 + $0xb0] sm:$0xff]
  %v440 = vld [vmem:[#allocation2 + $0xb8] sm:$0xff]
  %v441 = vld [vmem:[#allocation2 + $0xc0] sm:$0xff]
  %v442 = vld [vmem:[#allocation2 + $0xc8] sm:$0xff]
  %v443 = vld [vmem:[#allocation2 + $0xd0] sm:$0xff]
  %v444 = vld [vmem:[#allocation2 + $0xd8] sm:$0xff]
  %v445 = vld [vmem:[#allocation2 + $0xe0] sm:$0xff]
  %v446 = vld [vmem:[#allocation2 + $0xe8] sm:$0xff]
  %v447 = vld [vmem:[#allocation2 + $0xf0] sm:$0xff]
  %v448 = vld [vmem:[#allocation2 + $0xf8] sm:$0xff]
  %v449 = vld [vmem:[#allocation2 + $0x100] sm:$0xff]
  %v450 = vld [vmem:[#allocation2 + $0x108] sm:$0xff]
  %v451 = vld [vmem:[#allocation2 + $0x110] sm:$0xff]
  %v452 = vld [vmem:[#allocation2 + $0x118] sm:$0xff]
  %v453 = vld [vmem:[#allocation2 + $0x120] sm:$0xff]
  %v454 = vld [vmem:[#allocation2 + $0x128] sm:$0xff]
  %v455 = vld [vmem:[#allocation2 + $0x130] sm:$0xff]
  %v456 = vld [vmem:[#allocation2 + $0x138] sm:$0xff]
  %v457 = vld [vmem:[#allocation2 + $0x140] sm:$0xff]
  %v458 = vld [vmem:[#allocation2 + $0x148] sm:$0xff]
  %v459 = vld [vmem:[#allocation2 + $0x150] sm:$0xff]
  %v460 = vld [vmem:[#allocation2 + $0x158] sm:$0xff]
  %v461 = vld [vmem:[#allocation2 + $0x160] sm:$0xff]
  %v462 = vld [vmem:[#allocation2 + $0x168] sm:$0xff]
  %v463 = vld [vmem:[#allocation2 + $0x170] sm:$0xff]
  %v464 = vld [vmem:[#allocation2 + $0x178] sm:$0xff]
  %v465 = vld [vmem:[#allocation2 + $0x180] sm:$0xff]
  %v466 = vld [vmem:[#allocation2 + $0x188] sm:$0xff]
  %v467 = vld [vmem:[#allocation2 + $0x190] sm:$0xff]
  %v468 = vld [vmem:[#allocation2 + $0x198] sm:$0xff]
  %v469 = vld [vmem:[#allocation2 + $0x1a0] sm:$0xff]
  %v470 = vld [vmem:[#allocation2 + $0x1a8] sm:$0xff]
  %vm471 = vcmask 588800
  %v473 = vsel %vm471, %v416, 0
  %475 = vmatprep.subr.mxu0 %v418
  %476 = vmatpush1.msra.mxu0 %v417
  %477 = vmatprep.subr.mxu0 %v424
  %478 = vmatpush1.msra.mxu0 %v423
  %479 = vmatprep.subr.mxu0 %v430
  %480 = vmatpush1.msra.mxu0 %v429
  %481 = vmatprep.subr.mxu0 %v436
  %482 = vmatpush1.msra.mxu0 %v435
  %483 = vmatprep.subr.mxu0 %v442
  %484 = vmatpush1.msra.mxu0 %v441
  %485 = vmatprep.subr.mxu0 %v448
  %486 = vmatpush1.msra.mxu0 %v447
  %487 = vmatprep.subr.mxu0 %v454
  %488 = vmatpush1.msra.mxu0 %v453
  %489 = vmatprep.subr.mxu0 %v460
  %490 = vmatpush1.msra.mxu0 %v459
  %491 = vmatprep.subr.mxu0 %v466
  %492 = vmatpush1.msra.mxu0 %v465
  %493 = vmatprep.subr.mxu0 0.0
  %494 = vmatpush1.msra.mxu0 0.0
  %495 = vmatprep.subr.mxu0 0.0
  %496 = vmatpush1.msra.mxu0 0.0
  %497 = vmatprep.subr.mxu0 0.0
  %498 = vmatpush1.msra.mxu0 0.0
  %499 = vmatprep.subr.mxu0 0.0
  %500 = vmatpush1.msra.mxu0 0.0
  %501 = vmatprep.subr.mxu0 0.0
  %502 = vmatpush1.msra.mxu0 0.0
  %503 = vmatprep.subr.mxu0 0.0
  %504 = vmatpush1.msra.mxu0 0.0
  %505 = vmatprep.subr.mxu0 0.0
  %506 = vmatpush1.msra.mxu0 0.0
  %507 = vmatprep.subr.mxu0 0.0
  %508 = vmatpush1.msra.mxu0 0.0
  %509 = vmatprep.subr.mxu0 0.0
  %510 = vmatpush1.msra.mxu0 0.0
  %511 = vmatprep.subr.mxu0 0.0
  %512 = vmatpush1.msra.mxu0 0.0
  %513 = vmatprep.subr.mxu0 0.0
  %514 = vmatpush1.msra.mxu0 0.0
  %515 = vmatprep.subr.mxu0 0.0
  %516 = vmatpush1.msra.mxu0 0.0
  %517 = vmatprep.subr.mxu0 0.0
  %518 = vmatpush1.msra.mxu0 0.0
  %519 = vmatprep.subr.mxu0 0.0
  %520 = vmatpush1.msra.mxu0 0.0
  %521 = vmatprep.subr.mxu0 0.0
  %522 = vmatpush1.msra.mxu0 0.0
  %523 = vmatprep.subr.mxu0 0.0
  %524 = vmatpush1.msra.mxu0 0.0
  %525 = vmatprep.subr.mxu0 0.0
  %526 = vmatpush1.msra.mxu0 0.0
  %527 = vmatprep.subr.mxu0 0.0
  %528 = vmatpush1.msra.mxu0 0.0
  %529 = vmatprep.subr.mxu0 0.0
  %530 = vmatpush1.msra.mxu0 0.0
  %531 = vmatprep.subr.mxu0 0.0
  %532 = vmatpush1.msra.mxu0 0.0
  %533 = vmatprep.subr.mxu0 0.0
  %534 = vmatpush1.msra.mxu0 0.0
  %535 = vmatprep.subr.mxu0 0.0
  %536 = vmatpush1.msra.mxu0 0.0
  %537 = vmatprep.subr.mxu0 0.0
  %538 = vmatpush1.msra.mxu0 0.0
  %539 = vmatprep.mubr.f32.mxu0 0.0
  %540 = vmatmul.mubr.f32.gmra.mrb[0].mxu0 %v473
  %v541 = vpop.f32.mrb[0].mxu0
  %v542 = vadd.f32 0.0, %v541
  %v543 = vpop.f32.mrb[0].mxu0
  %v544 = vadd.f32 0.0, %v543
  %545 = vdwg.mxu0
  %546 = vmatprep.subr.mxu0 %v420
  %547 = vmatpush1.msra.mxu0 %v419
  %548 = vmatprep.subr.mxu0 %v426
  %549 = vmatpush1.msra.mxu0 %v425
  %550 = vmatprep.subr.mxu0 %v432
  %551 = vmatpush1.msra.mxu0 %v431
  %552 = vmatprep.subr.mxu0 %v438
  %553 = vmatpush1.msra.mxu0 %v437
  %554 = vmatprep.subr.mxu0 %v444
  %555 = vmatpush1.msra.mxu0 %v443
  %556 = vmatprep.subr.mxu0 %v450
  %557 = vmatpush1.msra.mxu0 %v449
  %558 = vmatprep.subr.mxu0 %v456
  %559 = vmatpush1.msra.mxu0 %v455
  %560 = vmatprep.subr.mxu0 %v462
  %561 = vmatpush1.msra.mxu0 %v461
  %562 = vmatprep.subr.mxu0 %v468
  %563 = vmatpush1.msra.mxu0 %v467
  %564 = vmatprep.subr.mxu0 0.0
  %565 = vmatpush1.msra.mxu0 0.0
  %566 = vmatprep.subr.mxu0 0.0
  %567 = vmatpush1.msra.mxu0 0.0
  %568 = vmatprep.subr.mxu0 0.0
  %569 = vmatpush1.msra.mxu0 0.0
  %570 = vmatprep.subr.mxu0 0.0
  %571 = vmatpush1.msra.mxu0 0.0
  %572 = vmatprep.subr.mxu0 0.0
  %573 = vmatpush1.msra.mxu0 0.0
  %574 = vmatprep.subr.mxu0 0.0
  %575 = vmatpush1.msra.mxu0 0.0
  %576 = vmatprep.subr.mxu0 0.0
  %577 = vmatpush1.msra.mxu0 0.0
  %578 = vmatprep.subr.mxu0 0.0
  %579 = vmatpush1.msra.mxu0 0.0
  %580 = vmatprep.subr.mxu0 0.0
  %581 = vmatpush1.msra.mxu0 0.0
  %582 = vmatprep.subr.mxu0 0.0
  %583 = vmatpush1.msra.mxu0 0.0
  %584 = vmatprep.subr.mxu0 0.0
  %585 = vmatpush1.msra.mxu0 0.0
  %586 = vmatprep.subr.mxu0 0.0
  %587 = vmatpush1.msra.mxu0 0.0
  %588 = vmatprep.subr.mxu0 0.0
  %589 = vmatpush1.msra.mxu0 0.0
  %590 = vmatprep.subr.mxu0 0.0
  %591 = vmatpush1.msra.mxu0 0.0
  %592 = vmatprep.subr.mxu0 0.0
  %593 = vmatpush1.msra.mxu0 0.0
  %594 = vmatprep.subr.mxu0 0.0
  %595 = vmatpush1.msra.mxu0 0.0
  %596 = vmatprep.subr.mxu0 0.0
  %597 = vmatpush1.msra.mxu0 0.0
  %598 = vmatprep.subr.mxu0 0.0
  %599 = vmatpush1.msra.mxu0 0.0
  %600 = vmatprep.subr.mxu0 0.0
  %601 = vmatpush1.msra.mxu0 0.0
  %602 = vmatprep.subr.mxu0 0.0
  %603 = vmatpush1.msra.mxu0 0.0
  %604 = vmatprep.subr.mxu0 0.0
  %605 = vmatpush1.msra.mxu0 0.0
  %606 = vmatprep.subr.mxu0 0.0
  %607 = vmatpush1.msra.mxu0 0.0
  %608 = vmatprep.subr.mxu0 0.0
  %609 = vmatpush1.msra.mxu0 0.0
  %610 = vmatprep.mubr.f32.mxu0 0.0
  %611 = vmatmul.mubr.f32.gmra.mrb[0].mxu0 %v473
  %v612 = vpop.f32.mrb[0].mxu0
  %v613 = vadd.f32 0.0, %v612
  %v614 = vpop.f32.mrb[0].mxu0
  %v615 = vadd.f32 0.0, %v614
  %616 = vdwg.mxu0
  %617 = vmatprep.subr.mxu0 %v422
  %618 = vmatpush1.msra.mxu0 %v421
  %619 = vmatprep.subr.mxu0 %v428
  %620 = vmatpush1.msra.mxu0 %v427
  %621 = vmatprep.subr.mxu0 %v434
  %622 = vmatpush1.msra.mxu0 %v433
  %623 = vmatprep.subr.mxu0 %v440
  %624 = vmatpush1.msra.mxu0 %v439
  %625 = vmatprep.subr.mxu0 %v446
  %626 = vmatpush1.msra.mxu0 %v445
  %627 = vmatprep.subr.mxu0 %v452
  %628 = vmatpush1.msra.mxu0 %v451
  %629 = vmatprep.subr.mxu0 %v458
  %630 = vmatpush1.msra.mxu0 %v457
  %631 = vmatprep.subr.mxu0 %v464
  %632 = vmatpush1.msra.mxu0 %v463
  %633 = vmatprep.subr.mxu0 %v470
  %634 = vmatpush1.msra.mxu0 %v469
  %635 = vmatprep.subr.mxu0 0.0
  %636 = vmatpush1.msra.mxu0 0.0
  %637 = vmatprep.subr.mxu0 0.0
  %638 = vmatpush1.msra.mxu0 0.0
  %639 = vmatprep.subr.mxu0 0.0
  %640 = vmatpush1.msra.mxu0 0.0
  %641 = vmatprep.subr.mxu0 0.0
  %642 = vmatpush1.msra.mxu0 0.0
  %643 = vmatprep.subr.mxu0 0.0
  %644 = vmatpush1.msra.mxu0 0.0
  %645 = vmatprep.subr.mxu0 0.0
  %646 = vmatpush1.msra.mxu0 0.0
  %647 = vmatprep.subr.mxu0 0.0
  %648 = vmatpush1.msra.mxu0 0.0
  %649 = vmatprep.subr.mxu0 0.0
  %650 = vmatpush1.msra.mxu0 0.0
  %651 = vmatprep.subr.mxu0 0.0
  %652 = vmatpush1.msra.mxu0 0.0
  %653 = vmatprep.subr.mxu0 0.0
  %654 = vmatpush1.msra.mxu0 0.0
  %655 = vmatprep.subr.mxu0 0.0
  %656 = vmatpush1.msra.mxu0 0.0
  %657 = vmatprep.subr.mxu0 0.0
  %658 = vmatpush1.msra.mxu0 0.0
  %659 = vmatprep.subr.mxu0 0.0
  %660 = vmatpush1.msra.mxu0 0.0
  %661 = vmatprep.subr.mxu0 0.0
  %662 = vmatpush1.msra.mxu0 0.0
  %663 = vmatprep.subr.mxu0 0.0
  %664 = vmatpush1.msra.mxu0 0.0
  %665 = vmatprep.subr.mxu0 0.0
  %666 = vmatpush1.msra.mxu0 0.0
  %667 = vmatprep.subr.mxu0 0.0
  %668 = vmatpush1.msra.mxu0 0.0
  %669 = vmatprep.subr.mxu0 0.0
  %670 = vmatpush1.msra.mxu0 0.0
  %671 = vmatprep.subr.mxu0 0.0
  %672 = vmatpush1.msra.mxu0 0.0
  %673 = vmatprep.subr.mxu0 0.0
  %674 = vmatpush1.msra.mxu0 0.0
  %675 = vmatprep.subr.mxu0 0.0
  %676 = vmatpush1.msra.mxu0 0.0
  %677 = vmatprep.subr.mxu0 0.0
  %678 = vmatpush1.msra.mxu0 0.0
  %679 = vmatprep.subr.mxu0 0.0
  %680 = vmatpush1.msra.mxu0 0.0
  %681 = vmatprep.mubr.f32.mxu0 0.0
  %682 = vmatmul.mubr.f32.gmra.mrb[0].mxu0 %v473
  %v683 = vpop.f32.mrb[0].mxu0
  %v684 = vadd.f32 0.0, %v683
  %v685 = vpop.f32.mrb[0].mxu0
  %v686 = vadd.f32 0.0, %v685
  %687 = vdwg.mxu0
  %v689 = vlaneseq
  %v690 = vshrl.u32 %v689, 7
  %v691 = vsub.s32 0, %v690
  %v692 = vrot.slane %v20, %v691
  %v693 = vlaneseq
  %v694 = vshrl.u32 %v693, 7
  %v695 = vsub.s32 1, %v694
  %v696 = vrot.slane %v20, %v695
  %v697 = vlaneseq
  %v698 = vshrl.u32 %v697, 7
  %v699 = vsub.s32 2, %v698
  %v700 = vrot.slane %v20, %v699
  %v701 = vlaneseq
  %v702 = vshrl.u32 %v701, 7
  %v703 = vsub.s32 3, %v702
  %v704 = vrot.slane %v20, %v703
  %v705 = vlaneseq
  %v706 = vshrl.u32 %v705, 7
  %v707 = vsub.s32 4, %v706
  %v708 = vrot.slane %v20, %v707
  %v709 = vlaneseq
  %v710 = vshrl.u32 %v709, 7
  %v711 = vsub.s32 5, %v710
  %v712 = vrot.slane %v20, %v711
  %v719 = vmul.f32 %v542, %v692
  %v720 = vmul.f32 %v544, %v696
  %v721 = vmul.f32 %v613, %v700
  %v722 = vmul.f32 %v615, %v704
  %v723 = vmul.f32 %v684, %v708
  %v724 = vmul.f32 %v686, %v712
  %v725 = vadd.f32 %v719, %v720
  %v726 = vadd.f32 %v725, %v721
  %v727 = vadd.f32 %v726, %v722
  %v728 = vadd.f32 %v727, %v723
  %v729 = vadd.f32 %v728, %v724
  %730 = vadd.xlane.f32.xlu0 %v729
  %v731 = vpop.xlane.xlu0 %730
  %v732 = vmul.f32 %v542, %v719
  %v733 = vmul.f32 %v544, %v720
  %v734 = vmul.f32 %v613, %v721
  %v735 = vmul.f32 %v615, %v722
  %v736 = vmul.f32 %v684, %v723
  %v737 = vmul.f32 %v686, %v724
  %v738 = vadd.f32 %v732, %v733
  %v739 = vadd.f32 %v738, %v734
  %v740 = vadd.f32 %v739, %v735
  %v741 = vadd.f32 %v740, %v736
  %v742 = vadd.f32 %v741, %v737
  %743 = vadd.xlane.f32.xlu0 %v742
  %v744 = vpop.xlane.xlu0 %743
  %v745 = vmul.f32 %v731, 0.001953125
  %v746 = vmul.f32 %v744, 0.001953125
  %v747 = vmul.f32 %v745, %v745
  %v748 = vsub.f32 %v746, %v747
  %v749 = vmax.f32 %v748, 0.0
  %v750 = vadd.f32 %v749, 1e-05
  %v751 = vrsqrt.pop %v750
  %v752 = vmul.f32 %v751, %v21
  %v753 = vmul.f32 %v745, %v752
  %755 = vrot.lane.b32.xlu0 %v753, 1
  %v756 = vpop.permute.xlu0 %755
  %v758 = vsub.f32 %v21, %v756
  %760 = vset.pattern.permute.xlu0 0
  %761 = vperm.xlu0 %760, %v752
  %v762 = vpop.permute.xlu0 %761
  %v764 = vmul.f32 %v542, %v762
  %v765 = vmul.f32 %v544, %v762
  %v766 = vmul.f32 %v613, %v762
  %v767 = vmul.f32 %v615, %v762
  %v768 = vmul.f32 %v684, %v762
  %v769 = vmul.f32 %v686, %v762
  %771 = vset.pattern.permute.xlu0 1
  %772 = vperm.xlu0 %771, %v758
  %v773 = vpop.permute.xlu0 %772
  %v775 = vadd.f32 %v764, %v773
  %v776 = vadd.f32 %v765, %v773
  %v777 = vadd.f32 %v766, %v773
  %v778 = vadd.f32 %v767, %v773
  %v779 = vadd.f32 %v768, %v773
  %v780 = vadd.f32 %v769, %v773
  %v781 = vmax.f32 %v775, 0.0
  %v782 = vmax.f32 %v776, 0.0
  %v783 = vmax.f32 %v777, 0.0
  %v784 = vmax.f32 %v778, 0.0
  %v785 = vmax.f32 %v779, 0.0
  %v786 = vmax.f32 %v780, 0.0
  %v787 = vmul.f32 %v781, %v692
  %v788 = vmul.f32 %v782, %v696
  %v789 = vmul.f32 %v783, %v700
  %v790 = vmul.f32 %v784, %v704
  %v791 = vmul.f32 %v785, %v708
  %v792 = vmul.f32 %v786, %v712
  %793 = vst [vmem:[#allocation4] sm:$0xff] 0.0
  %794 = vst [vmem:[#allocation4 + $0x38] sm:$0xff] 0.0
  %795 = vst [vmem:[#allocation4 + $0x8] sm:$0xff] %v787
  %796 = vst [vmem:[#allocation4 + $0x10] sm:$0xff] %v788
  %797 = vst [vmem:[#allocation4 + $0x18] sm:$0xff] %v789
  %798 = vst [vmem:[#allocation4 + $0x20] sm:$0xff] %v790
  %799 = vst [vmem:[#allocation4 + $0x28] sm:$0xff] %v791
  %800 = vst [vmem:[#allocation4 + $0x30] sm:$0xff] %v792
  %v801 = vld [vmem:[#allocation4] sm:$0xff]
  %v802 = vld [vmem:[#allocation4 + $0x8] sm:$0xff]
  %v803 = vld [vmem:[#allocation4 + $0x10] sm:$0xff]
  %v804 = vld [vmem:[#allocation4 + $0x18] sm:$0xff]
  %v805 = vld [vmem:[#allocation4 + $0x20] sm:$0xff]
  %v806 = vld [vmem:[#allocation4 + $0x28] sm:$0xff]
  %v807 = vld [vmem:[#allocation4 + $0x30] sm:$0xff]
  %815 = vrot.lane.b32.xlu0 %v801, 19
  %v816 = vpop.permute.xlu0 %815
  %817 = vrot.lane.b32.xlu0 %v802, 19
  %v818 = vpop.permute.xlu0 %817
  %819 = vrot.lane.b32.xlu0 %v803, 19
  %v820 = vpop.permute.xlu0 %819
  %821 = vrot.lane.b32.xlu0 %v804, 19
  %v822 = vpop.permute.xlu0 %821
  %823 = vrot.lane.b32.xlu0 %v805, 19
  %v824 = vpop.permute.xlu0 %823
  %825 = vrot.lane.b32.xlu0 %v806, 19
  %v826 = vpop.permute.xlu0 %825
  %827 = vrot.lane.b32.xlu0 %v807, 19
  %v828 = vpop.permute.xlu0 %827
  %vm829 = vcmask 154624
  %v830 = vsel %vm829, %v816, %v818
  %v831 = vsel %vm829, %v818, %v820
  %v832 = vsel %vm829, %v820, %v822
  %v833 = vsel %vm829, %v822, %v824
  %v834 = vsel %vm829, %v824, %v826
  %v835 = vsel %vm829, %v826, %v828
  %842 = vst [vmem:[#allocation3] sm:$0xff] %v830
  %843 = vst [vmem:[#allocation3 + $0x8] sm:$0xff] %v831
  %844 = vst [vmem:[#allocation3 + $0x10] sm:$0xff] %v832
  %845 = vst [vmem:[#allocation3 + $0x18] sm:$0xff] %v833
  %846 = vst [vmem:[#allocation3 + $0x20] sm:$0xff] %v834
  %847 = vst [vmem:[#allocation3 + $0x28] sm:$0xff] %v835
  %v848 = vld [vmem:[#allocation4] sm:$0xff]
  %v849 = vld [vmem:[#allocation4 + $0x8] sm:$0xff]
  %v850 = vld [vmem:[#allocation4 + $0x10] sm:$0xff]
  %v851 = vld [vmem:[#allocation4 + $0x18] sm:$0xff]
  %v852 = vld [vmem:[#allocation4 + $0x20] sm:$0xff]
  %v853 = vld [vmem:[#allocation4 + $0x28] sm:$0xff]
  %v854 = vld [vmem:[#allocation4 + $0x30] sm:$0xff]
  %862 = vrot.lane.b32.xlu0 %v848, 18
  %v863 = vpop.permute.xlu0 %862
  %864 = vrot.lane.b32.xlu0 %v849, 18
  %v865 = vpop.permute.xlu0 %864
  %866 = vrot.lane.b32.xlu0 %v850, 18
  %v867 = vpop.permute.xlu0 %866
  %868 = vrot.lane.b32.xlu0 %v851, 18
  %v869 = vpop.permute.xlu0 %868
  %870 = vrot.lane.b32.xlu0 %v852, 18
  %v871 = vpop.permute.xlu0 %870
  %872 = vrot.lane.b32.xlu0 %v853, 18
  %v873 = vpop.permute.xlu0 %872
  %874 = vrot.lane.b32.xlu0 %v854, 18
  %v875 = vpop.permute.xlu0 %874
  %vm876 = vcmask 146432
  %v877 = vsel %vm876, %v863, %v865
  %v878 = vsel %vm876, %v865, %v867
  %v879 = vsel %vm876, %v867, %v869
  %v880 = vsel %vm876, %v869, %v871
  %v881 = vsel %vm876, %v871, %v873
  %v882 = vsel %vm876, %v873, %v875
  %889 = vst [vmem:[#allocation3 + $0x30] sm:$0xff] %v877
  %890 = vst [vmem:[#allocation3 + $0x38] sm:$0xff] %v878
  %891 = vst [vmem:[#allocation3 + $0x40] sm:$0xff] %v879
  %892 = vst [vmem:[#allocation3 + $0x48] sm:$0xff] %v880
  %893 = vst [vmem:[#allocation3 + $0x50] sm:$0xff] %v881
  %894 = vst [vmem:[#allocation3 + $0x58] sm:$0xff] %v882
  %v895 = vld [vmem:[#allocation4] sm:$0xff]
  %v896 = vld [vmem:[#allocation4 + $0x8] sm:$0xff]
  %v897 = vld [vmem:[#allocation4 + $0x10] sm:$0xff]
  %v898 = vld [vmem:[#allocation4 + $0x18] sm:$0xff]
  %v899 = vld [vmem:[#allocation4 + $0x20] sm:$0xff]
  %v900 = vld [vmem:[#allocation4 + $0x28] sm:$0xff]
  %v901 = vld [vmem:[#allocation4 + $0x30] sm:$0xff]
  %909 = vrot.lane.b32.xlu0 %v895, 17
  %v910 = vpop.permute.xlu0 %909
  %911 = vrot.lane.b32.xlu0 %v896, 17
  %v912 = vpop.permute.xlu0 %911
  %913 = vrot.lane.b32.xlu0 %v897, 17
  %v914 = vpop.permute.xlu0 %913
  %915 = vrot.lane.b32.xlu0 %v898, 17
  %v916 = vpop.permute.xlu0 %915
  %917 = vrot.lane.b32.xlu0 %v899, 17
  %v918 = vpop.permute.xlu0 %917
  %919 = vrot.lane.b32.xlu0 %v900, 17
  %v920 = vpop.permute.xlu0 %919
  %921 = vrot.lane.b32.xlu0 %v901, 17
  %v922 = vpop.permute.xlu0 %921
  %vm923 = vcmask 138240
  %v924 = vsel %vm923, %v910, %v912
  %v925 = vsel %vm923, %v912, %v914
  %v926 = vsel %vm923, %v914, %v916
  %v927 = vsel %vm923, %v916, %v918
  %v928 = vsel %vm923, %v918, %v920
  %v929 = vsel %vm923, %v920, %v922
  %936 = vst [vmem:[#allocation3 + $0x60] sm:$0xff] %v924
  %937 = vst [vmem:[#allocation3 + $0x68] sm:$0xff] %v925
  %938 = vst [vmem:[#allocation3 + $0x70] sm:$0xff] %v926
  %939 = vst [vmem:[#allocation3 + $0x78] sm:$0xff] %v927
  %940 = vst [vmem:[#allocation3 + $0x80] sm:$0xff] %v928
  %941 = vst [vmem:[#allocation3 + $0x88] sm:$0xff] %v929
  %v942 = vld [vmem:[#allocation4] sm:$0xff]
  %v943 = vld [vmem:[#allocation4 + $0x8] sm:$0xff]
  %v944 = vld [vmem:[#allocation4 + $0x10] sm:$0xff]
  %v945 = vld [vmem:[#allocation4 + $0x18] sm:$0xff]
  %v946 = vld [vmem:[#allocation4 + $0x20] sm:$0xff]
  %v947 = vld [vmem:[#allocation4 + $0x28] sm:$0xff]
  %v948 = vld [vmem:[#allocation4 + $0x30] sm:$0xff]
  %956 = vrot.lane.b32.xlu0 %v942, 1
  %v957 = vpop.permute.xlu0 %956
  %958 = vrot.lane.b32.xlu0 %v943, 1
  %v959 = vpop.permute.xlu0 %958
  %960 = vrot.lane.b32.xlu0 %v944, 1
  %v961 = vpop.permute.xlu0 %960
  %962 = vrot.lane.b32.xlu0 %v945, 1
  %v963 = vpop.permute.xlu0 %962
  %964 = vrot.lane.b32.xlu0 %v946, 1
  %v965 = vpop.permute.xlu0 %964
  %966 = vrot.lane.b32.xlu0 %v947, 1
  %v967 = vpop.permute.xlu0 %966
  %968 = vrot.lane.b32.xlu0 %v948, 1
  %v969 = vpop.permute.xlu0 %968
  %vm970 = vcmask 7168
  %v971 = vsel %vm970, %v957, %v959
  %v972 = vsel %vm970, %v959, %v961
  %v973 = vsel %vm970, %v961, %v963
  %v974 = vsel %vm970, %v963, %v965
  %v975 = vsel %vm970, %v965, %v967
  %v976 = vsel %vm970, %v967, %v969
  %983 = vst [vmem:[#allocation3 + $0x90] sm:$0xff] %v971
  %984 = vst [vmem:[#allocation3 + $0x98] sm:$0xff] %v972
  %985 = vst [vmem:[#allocation3 + $0xa0] sm:$0xff] %v973
  %986 = vst [vmem:[#allocation3 + $0xa8] sm:$0xff] %v974
  %987 = vst [vmem:[#allocation3 + $0xb0] sm:$0xff] %v975
  %988 = vst [vmem:[#allocation3 + $0xb8] sm:$0xff] %v976
  %v989 = vld [vmem:[#allocation4 + $0x8] sm:$0xff]
  %v990 = vld [vmem:[#allocation4 + $0x10] sm:$0xff]
  %v991 = vld [vmem:[#allocation4 + $0x18] sm:$0xff]
  %v992 = vld [vmem:[#allocation4 + $0x20] sm:$0xff]
  %v993 = vld [vmem:[#allocation4 + $0x28] sm:$0xff]
  %v994 = vld [vmem:[#allocation4 + $0x30] sm:$0xff]
  %995 = vst [vmem:[#allocation3 + $0xc0] sm:$0xff] %v989
  %996 = vst [vmem:[#allocation3 + $0xc8] sm:$0xff] %v990
  %997 = vst [vmem:[#allocation3 + $0xd0] sm:$0xff] %v991
  %998 = vst [vmem:[#allocation3 + $0xd8] sm:$0xff] %v992
  %999 = vst [vmem:[#allocation3 + $0xe0] sm:$0xff] %v993
  %1000 = vst [vmem:[#allocation3 + $0xe8] sm:$0xff] %v994
  %v1001 = vld [vmem:[#allocation4 + $0x8] sm:$0xff]
  %v1002 = vld [vmem:[#allocation4 + $0x10] sm:$0xff]
  %v1003 = vld [vmem:[#allocation4 + $0x18] sm:$0xff]
  %v1004 = vld [vmem:[#allocation4 + $0x20] sm:$0xff]
  %v1005 = vld [vmem:[#allocation4 + $0x28] sm:$0xff]
  %v1006 = vld [vmem:[#allocation4 + $0x30] sm:$0xff]
  %v1007 = vld [vmem:[#allocation4 + $0x38] sm:$0xff]
  %1015 = vrot.lane.b32.xlu0 %v1001, 127
  %v1016 = vpop.permute.xlu0 %1015
  %1017 = vrot.lane.b32.xlu0 %v1002, 127
  %v1018 = vpop.permute.xlu0 %1017
  %1019 = vrot.lane.b32.xlu0 %v1003, 127
  %v1020 = vpop.permute.xlu0 %1019
  %1021 = vrot.lane.b32.xlu0 %v1004, 127
  %v1022 = vpop.permute.xlu0 %1021
  %1023 = vrot.lane.b32.xlu0 %v1005, 127
  %v1024 = vpop.permute.xlu0 %1023
  %1025 = vrot.lane.b32.xlu0 %v1006, 127
  %v1026 = vpop.permute.xlu0 %1025
  %1027 = vrot.lane.b32.xlu0 %v1007, 127
  %v1028 = vpop.permute.xlu0 %1027
  %v1029 = vsel %vm62, %v1016, %v1018
  %v1030 = vsel %vm62, %v1018, %v1020
  %v1031 = vsel %vm62, %v1020, %v1022
  %v1032 = vsel %vm62, %v1022, %v1024
  %v1033 = vsel %vm62, %v1024, %v1026
  %v1034 = vsel %vm62, %v1026, %v1028
  %1041 = vst [vmem:[#allocation3 + $0xf0] sm:$0xff] %v1029
  %1042 = vst [vmem:[#allocation3 + $0xf8] sm:$0xff] %v1030
  %1043 = vst [vmem:[#allocation3 + $0x100] sm:$0xff] %v1031
  %1044 = vst [vmem:[#allocation3 + $0x108] sm:$0xff] %v1032
  %1045 = vst [vmem:[#allocation3 + $0x110] sm:$0xff] %v1033
  %1046 = vst [vmem:[#allocation3 + $0x118] sm:$0xff] %v1034
  %v1047 = vld [vmem:[#allocation4 + $0x8] sm:$0xff]
  %v1048 = vld [vmem:[#allocation4 + $0x10] sm:$0xff]
  %v1049 = vld [vmem:[#allocation4 + $0x18] sm:$0xff]
  %v1050 = vld [vmem:[#allocation4 + $0x20] sm:$0xff]
  %v1051 = vld [vmem:[#allocation4 + $0x28] sm:$0xff]
  %v1052 = vld [vmem:[#allocation4 + $0x30] sm:$0xff]
  %v1053 = vld [vmem:[#allocation4 + $0x38] sm:$0xff]
  %1061 = vrot.lane.b32.xlu0 %v1047, 111
  %v1062 = vpop.permute.xlu0 %1061
  %1063 = vrot.lane.b32.xlu0 %v1048, 111
  %v1064 = vpop.permute.xlu0 %1063
  %1065 = vrot.lane.b32.xlu0 %v1049, 111
  %v1066 = vpop.permute.xlu0 %1065
  %1067 = vrot.lane.b32.xlu0 %v1050, 111
  %v1068 = vpop.permute.xlu0 %1067
  %1069 = vrot.lane.b32.xlu0 %v1051, 111
  %v1070 = vpop.permute.xlu0 %1069
  %1071 = vrot.lane.b32.xlu0 %v1052, 111
  %v1072 = vpop.permute.xlu0 %1071
  %1073 = vrot.lane.b32.xlu0 %v1053, 111
  %v1074 = vpop.permute.xlu0 %1073
  %vm1075 = vcmask 908288
  %v1076 = vsel %vm1075, %v1062, %v1064
  %v1077 = vsel %vm1075, %v1064, %v1066
  %v1078 = vsel %vm1075, %v1066, %v1068
  %v1079 = vsel %vm1075, %v1068, %v1070
  %v1080 = vsel %vm1075, %v1070, %v1072
  %v1081 = vsel %vm1075, %v1072, %v1074
  %1088 = vst [vmem:[#allocation3 + $0x120] sm:$0xff] %v1076
  %1089 = vst [vmem:[#allocation3 + $0x128] sm:$0xff] %v1077
  %1090 = vst [vmem:[#allocation3 + $0x130] sm:$0xff] %v1078
  %1091 = vst [vmem:[#allocation3 + $0x138] sm:$0xff] %v1079
  %1092 = vst [vmem:[#allocation3 + $0x140] sm:$0xff] %v1080
  %1093 = vst [vmem:[#allocation3 + $0x148] sm:$0xff] %v1081
  %v1094 = vld [vmem:[#allocation4 + $0x8] sm:$0xff]
  %v1095 = vld [vmem:[#allocation4 + $0x10] sm:$0xff]
  %v1096 = vld [vmem:[#allocation4 + $0x18] sm:$0xff]
  %v1097 = vld [vmem:[#allocation4 + $0x20] sm:$0xff]
  %v1098 = vld [vmem:[#allocation4 + $0x28] sm:$0xff]
  %v1099 = vld [vmem:[#allocation4 + $0x30] sm:$0xff]
  %v1100 = vld [vmem:[#allocation4 + $0x38] sm:$0xff]
  %1108 = vrot.lane.b32.xlu0 %v1094, 110
  %v1109 = vpop.permute.xlu0 %1108
  %1110 = vrot.lane.b32.xlu0 %v1095, 110
  %v1111 = vpop.permute.xlu0 %1110
  %1112 = vrot.lane.b32.xlu0 %v1096, 110
  %v1113 = vpop.permute.xlu0 %1112
  %1114 = vrot.lane.b32.xlu0 %v1097, 110
  %v1115 = vpop.permute.xlu0 %1114
  %1116 = vrot.lane.b32.xlu0 %v1098, 110
  %v1117 = vpop.permute.xlu0 %1116
  %1118 = vrot.lane.b32.xlu0 %v1099, 110
  %v1119 = vpop.permute.xlu0 %1118
  %1120 = vrot.lane.b32.xlu0 %v1100, 110
  %v1121 = vpop.permute.xlu0 %1120
  %v1122 = vsel %vm156, %v1109, %v1111
  %v1123 = vsel %vm156, %v1111, %v1113
  %v1124 = vsel %vm156, %v1113, %v1115
  %v1125 = vsel %vm156, %v1115, %v1117
  %v1126 = vsel %vm156, %v1117, %v1119
  %v1127 = vsel %vm156, %v1119, %v1121
  %1134 = vst [vmem:[#allocation3 + $0x150] sm:$0xff] %v1122
  %1135 = vst [vmem:[#allocation3 + $0x158] sm:$0xff] %v1123
  %1136 = vst [vmem:[#allocation3 + $0x160] sm:$0xff] %v1124
  %1137 = vst [vmem:[#allocation3 + $0x168] sm:$0xff] %v1125
  %1138 = vst [vmem:[#allocation3 + $0x170] sm:$0xff] %v1126
  %1139 = vst [vmem:[#allocation3 + $0x178] sm:$0xff] %v1127
  %v1140 = vld [vmem:[#allocation4 + $0x8] sm:$0xff]
  %v1141 = vld [vmem:[#allocation4 + $0x10] sm:$0xff]
  %v1142 = vld [vmem:[#allocation4 + $0x18] sm:$0xff]
  %v1143 = vld [vmem:[#allocation4 + $0x20] sm:$0xff]
  %v1144 = vld [vmem:[#allocation4 + $0x28] sm:$0xff]
  %v1145 = vld [vmem:[#allocation4 + $0x30] sm:$0xff]
  %v1146 = vld [vmem:[#allocation4 + $0x38] sm:$0xff]
  %1154 = vrot.lane.b32.xlu0 %v1140, 109
  %v1155 = vpop.permute.xlu0 %1154
  %1156 = vrot.lane.b32.xlu0 %v1141, 109
  %v1157 = vpop.permute.xlu0 %1156
  %1158 = vrot.lane.b32.xlu0 %v1142, 109
  %v1159 = vpop.permute.xlu0 %1158
  %1160 = vrot.lane.b32.xlu0 %v1143, 109
  %v1161 = vpop.permute.xlu0 %1160
  %1162 = vrot.lane.b32.xlu0 %v1144, 109
  %v1163 = vpop.permute.xlu0 %1162
  %1164 = vrot.lane.b32.xlu0 %v1145, 109
  %v1165 = vpop.permute.xlu0 %1164
  %1166 = vrot.lane.b32.xlu0 %v1146, 109
  %v1167 = vpop.permute.xlu0 %1166
  %v1168 = vsel %vm203, %v1155, %v1157
  %v1169 = vsel %vm203, %v1157, %v1159
  %v1170 = vsel %vm203, %v1159, %v1161
  %v1171 = vsel %vm203, %v1161, %v1163
  %v1172 = vsel %vm203, %v1163, %v1165
  %v1173 = vsel %vm203, %v1165, %v1167
  %1180 = vst [vmem:[#allocation3 + $0x180] sm:$0xff] %v1168
  %1181 = vst [vmem:[#allocation3 + $0x188] sm:$0xff] %v1169
  %1182 = vst [vmem:[#allocation3 + $0x190] sm:$0xff] %v1170
  %1183 = vst [vmem:[#allocation3 + $0x198] sm:$0xff] %v1171
  %1184 = vst [vmem:[#allocation3 + $0x1a0] sm:$0xff] %v1172
  %1185 = vst [vmem:[#allocation3 + $0x1a8] sm:$0xff] %v1173
  %1186 = vst [vmem:[#allocation3 + $0x1b0] sm:$0xff] %v410
  %1187 = vst [vmem:[#allocation3 + $0x1b8] sm:$0xff] %v411
  %1188 = vst [vmem:[#allocation3 + $0x1c0] sm:$0xff] %v412
  %1189 = vst [vmem:[#allocation3 + $0x1c8] sm:$0xff] %v413
  %1190 = vst [vmem:[#allocation3 + $0x1d0] sm:$0xff] %v414
  %1191 = vst [vmem:[#allocation3 + $0x1d8] sm:$0xff] %v415
  %v1192 = vld [vmem:[%s4] sm:$0xff]
  %v1193 = vld [vmem:[#allocation3] sm:$0xff]
  %v1194 = vld [vmem:[#allocation3 + $0x8] sm:$0xff]
  %v1195 = vld [vmem:[#allocation3 + $0x10] sm:$0xff]
  %v1196 = vld [vmem:[#allocation3 + $0x18] sm:$0xff]
  %v1197 = vld [vmem:[#allocation3 + $0x20] sm:$0xff]
  %v1198 = vld [vmem:[#allocation3 + $0x28] sm:$0xff]
  %v1199 = vld [vmem:[#allocation3 + $0x30] sm:$0xff]
  %v1200 = vld [vmem:[#allocation3 + $0x38] sm:$0xff]
  %v1201 = vld [vmem:[#allocation3 + $0x40] sm:$0xff]
  %v1202 = vld [vmem:[#allocation3 + $0x48] sm:$0xff]
  %v1203 = vld [vmem:[#allocation3 + $0x50] sm:$0xff]
  %v1204 = vld [vmem:[#allocation3 + $0x58] sm:$0xff]
  %v1205 = vld [vmem:[#allocation3 + $0x60] sm:$0xff]
  %v1206 = vld [vmem:[#allocation3 + $0x68] sm:$0xff]
  %v1207 = vld [vmem:[#allocation3 + $0x70] sm:$0xff]
  %v1208 = vld [vmem:[#allocation3 + $0x78] sm:$0xff]
  %v1209 = vld [vmem:[#allocation3 + $0x80] sm:$0xff]
  %v1210 = vld [vmem:[#allocation3 + $0x88] sm:$0xff]
  %v1211 = vld [vmem:[#allocation3 + $0x90] sm:$0xff]
  %v1212 = vld [vmem:[#allocation3 + $0x98] sm:$0xff]
  %v1213 = vld [vmem:[#allocation3 + $0xa0] sm:$0xff]
  %v1214 = vld [vmem:[#allocation3 + $0xa8] sm:$0xff]
  %v1215 = vld [vmem:[#allocation3 + $0xb0] sm:$0xff]
  %v1216 = vld [vmem:[#allocation3 + $0xb8] sm:$0xff]
  %v1217 = vld [vmem:[#allocation3 + $0xc0] sm:$0xff]
  %v1218 = vld [vmem:[#allocation3 + $0xc8] sm:$0xff]
  %v1219 = vld [vmem:[#allocation3 + $0xd0] sm:$0xff]
  %v1220 = vld [vmem:[#allocation3 + $0xd8] sm:$0xff]
  %v1221 = vld [vmem:[#allocation3 + $0xe0] sm:$0xff]
  %v1222 = vld [vmem:[#allocation3 + $0xe8] sm:$0xff]
  %v1223 = vld [vmem:[#allocation3 + $0xf0] sm:$0xff]
  %v1224 = vld [vmem:[#allocation3 + $0xf8] sm:$0xff]
  %v1225 = vld [vmem:[#allocation3 + $0x100] sm:$0xff]
  %v1226 = vld [vmem:[#allocation3 + $0x108] sm:$0xff]
  %v1227 = vld [vmem:[#allocation3 + $0x110] sm:$0xff]
  %v1228 = vld [vmem:[#allocation3 + $0x118] sm:$0xff]
  %v1229 = vld [vmem:[#allocation3 + $0x120] sm:$0xff]
  %v1230 = vld [vmem:[#allocation3 + $0x128] sm:$0xff]
  %v1231 = vld [vmem:[#allocation3 + $0x130] sm:$0xff]
  %v1232 = vld [vmem:[#allocation3 + $0x138] sm:$0xff]
  %v1233 = vld [vmem:[#allocation3 + $0x140] sm:$0xff]
  %v1234 = vld [vmem:[#allocation3 + $0x148] sm:$0xff]
  %v1235 = vld [vmem:[#allocation3 + $0x150] sm:$0xff]
  %v1236 = vld [vmem:[#allocation3 + $0x158] sm:$0xff]
  %v1237 = vld [vmem:[#allocation3 + $0x160] sm:$0xff]
  %v1238 = vld [vmem:[#allocation3 + $0x168] sm:$0xff]
  %v1239 = vld [vmem:[#allocation3 + $0x170] sm:$0xff]
  %v1240 = vld [vmem:[#allocation3 + $0x178] sm:$0xff]
  %v1241 = vld [vmem:[#allocation3 + $0x180] sm:$0xff]
  %v1242 = vld [vmem:[#allocation3 + $0x188] sm:$0xff]
  %v1243 = vld [vmem:[#allocation3 + $0x190] sm:$0xff]
  %v1244 = vld [vmem:[#allocation3 + $0x198] sm:$0xff]
  %v1245 = vld [vmem:[#allocation3 + $0x1a0] sm:$0xff]
  %v1246 = vld [vmem:[#allocation3 + $0x1a8] sm:$0xff]
  %v1247 = vld [vmem:[#allocation3 + $0x1b0] sm:$0xff]
  %v1248 = vld [vmem:[#allocation3 + $0x1b8] sm:$0xff]
  %v1249 = vld [vmem:[#allocation3 + $0x1c0] sm:$0xff]
  %v1250 = vld [vmem:[#allocation3 + $0x1c8] sm:$0xff]
  %v1251 = vld [vmem:[#allocation3 + $0x1d0] sm:$0xff]
  %v1252 = vld [vmem:[#allocation3 + $0x1d8] sm:$0xff]
  %vm1253 = vcmask 654336
  %v1255 = vsel %vm1253, %v1192, 0
  %1257 = vmatprep.subr.mxu0 %v1194
  %1258 = vmatpush1.msra.mxu0 %v1193
  %1259 = vmatprep.subr.mxu0 %v1200
  %1260 = vmatpush1.msra.mxu0 %v1199
  %1261 = vmatprep.subr.mxu0 %v1206
  %1262 = vmatpush1.msra.mxu0 %v1205
  %1263 = vmatprep.subr.mxu0 %v1212
  %1264 = vmatpush1.msra.mxu0 %v1211
  %1265 = vmatprep.subr.mxu0 %v1218
  %1266 = vmatpush1.msra.mxu0 %v1217
  %1267 = vmatprep.subr.mxu0 %v1224
  %1268 = vmatpush1.msra.mxu0 %v1223
  %1269 = vmatprep.subr.mxu0 %v1230
  %1270 = vmatpush1.msra.mxu0 %v1229
  %1271 = vmatprep.subr.mxu0 %v1236
  %1272 = vmatpush1.msra.mxu0 %v1235
  %1273 = vmatprep.subr.mxu0 %v1242
  %1274 = vmatpush1.msra.mxu0 %v1241
  %1275 = vmatprep.subr.mxu0 %v1248
  %1276 = vmatpush1.msra.mxu0 %v1247
  %1277 = vmatprep.subr.mxu0 0.0
  %1278 = vmatpush1.msra.mxu0 0.0
  %1279 = vmatprep.subr.mxu0 0.0
  %1280 = vmatpush1.msra.mxu0 0.0
  %1281 = vmatprep.subr.mxu0 0.0
  %1282 = vmatpush1.msra.mxu0 0.0
  %1283 = vmatprep.subr.mxu0 0.0
  %1284 = vmatpush1.msra.mxu0 0.0
  %1285 = vmatprep.subr.mxu0 0.0
  %1286 = vmatpush1.msra.mxu0 0.0
  %1287 = vmatprep.subr.mxu0 0.0
  %1288 = vmatpush1.msra.mxu0 0.0
  %1289 = vmatprep.subr.mxu0 0.0
  %1290 = vmatpush1.msra.mxu0 0.0
  %1291 = vmatprep.subr.mxu0 0.0
  %1292 = vmatpush1.msra.mxu0 0.0
  %1293 = vmatprep.subr.mxu0 0.0
  %1294 = vmatpush1.msra.mxu0 0.0
  %1295 = vmatprep.subr.mxu0 0.0
  %1296 = vmatpush1.msra.mxu0 0.0
  %1297 = vmatprep.subr.mxu0 0.0
  %1298 = vmatpush1.msra.mxu0 0.0
  %1299 = vmatprep.subr.mxu0 0.0
  %1300 = vmatpush1.msra.mxu0 0.0
  %1301 = vmatprep.subr.mxu0 0.0
  %1302 = vmatpush1.msra.mxu0 0.0
  %1303 = vmatprep.subr.mxu0 0.0
  %1304 = vmatpush1.msra.mxu0 0.0
  %1305 = vmatprep.subr.mxu0 0.0
  %1306 = vmatpush1.msra.mxu0 0.0
  %1307 = vmatprep.subr.mxu0 0.0
  %1308 = vmatpush1.msra.mxu0 0.0
  %1309 = vmatprep.subr.mxu0 0.0
  %1310 = vmatpush1.msra.mxu0 0.0
  %1311 = vmatprep.subr.mxu0 0.0
  %1312 = vmatpush1.msra.mxu0 0.0
  %1313 = vmatprep.subr.mxu0 0.0
  %1314 = vmatpush1.msra.mxu0 0.0
  %1315 = vmatprep.subr.mxu0 0.0
  %1316 = vmatpush1.msra.mxu0 0.0
  %1317 = vmatprep.subr.mxu0 0.0
  %1318 = vmatpush1.msra.mxu0 0.0
  %1319 = vmatprep.subr.mxu0 0.0
  %1320 = vmatpush1.msra.mxu0 0.0
  %1321 = vmatprep.mubr.f32.mxu0 0.0
  %1322 = vmatmul.mubr.f32.gmra.mrb[0].mxu0 %v1255
  %v1323 = vpop.f32.mrb[0].mxu0
  %v1324 = vadd.f32 0.0, %v1323
  %v1325 = vpop.f32.mrb[0].mxu0
  %v1326 = vadd.f32 0.0, %v1325
  %1327 = vdwg.mxu0
  %1328 = vmatprep.subr.mxu0 %v1196
  %1329 = vmatpush1.msra.mxu0 %v1195
  %1330 = vmatprep.subr.mxu0 %v1202
  %1331 = vmatpush1.msra.mxu0 %v1201
  %1332 = vmatprep.subr.mxu0 %v1208
  %1333 = vmatpush1.msra.mxu0 %v1207
  %1334 = vmatprep.subr.mxu0 %v1214
  %1335 = vmatpush1.msra.mxu0 %v1213
  %1336 = vmatprep.subr.mxu0 %v1220
  %1337 = vmatpush1.msra.mxu0 %v1219
  %1338 = vmatprep.subr.mxu0 %v1226
  %1339 = vmatpush1.msra.mxu0 %v1225
  %1340 = vmatprep.subr.mxu0 %v1232
  %1341 = vmatpush1.msra.mxu0 %v1231
  %1342 = vmatprep.subr.mxu0 %v1238
  %1343 = vmatpush1.msra.mxu0 %v1237
  %1344 = vmatprep.subr.mxu0 %v1244
  %1345 = vmatpush1.msra.mxu0 %v1243
  %1346 = vmatprep.subr.mxu0 %v1250
  %1347 = vmatpush1.msra.mxu0 %v1249
  %1348 = vmatprep.subr.mxu0 0.0
  %1349 = vmatpush1.msra.mxu0 0.0
  %1350 = vmatprep.subr.mxu0 0.0
  %1351 = vmatpush1.msra.mxu0 0.0
  %1352 = vmatprep.subr.mxu0 0.0
  %1353 = vmatpush1.msra.mxu0 0.0
  %1354 = vmatprep.subr.mxu0 0.0
  %1355 = vmatpush1.msra.mxu0 0.0
  %1356 = vmatprep.subr.mxu0 0.0
  %1357 = vmatpush1.msra.mxu0 0.0
  %1358 = vmatprep.subr.mxu0 0.0
  %1359 = vmatpush1.msra.mxu0 0.0
  %1360 = vmatprep.subr.mxu0 0.0
  %1361 = vmatpush1.msra.mxu0 0.0
  %1362 = vmatprep.subr.mxu0 0.0
  %1363 = vmatpush1.msra.mxu0 0.0
  %1364 = vmatprep.subr.mxu0 0.0
  %1365 = vmatpush1.msra.mxu0 0.0
  %1366 = vmatprep.subr.mxu0 0.0
  %1367 = vmatpush1.msra.mxu0 0.0
  %1368 = vmatprep.subr.mxu0 0.0
  %1369 = vmatpush1.msra.mxu0 0.0
  %1370 = vmatprep.subr.mxu0 0.0
  %1371 = vmatpush1.msra.mxu0 0.0
  %1372 = vmatprep.subr.mxu0 0.0
  %1373 = vmatpush1.msra.mxu0 0.0
  %1374 = vmatprep.subr.mxu0 0.0
  %1375 = vmatpush1.msra.mxu0 0.0
  %1376 = vmatprep.subr.mxu0 0.0
  %1377 = vmatpush1.msra.mxu0 0.0
  %1378 = vmatprep.subr.mxu0 0.0
  %1379 = vmatpush1.msra.mxu0 0.0
  %1380 = vmatprep.subr.mxu0 0.0
  %1381 = vmatpush1.msra.mxu0 0.0
  %1382 = vmatprep.subr.mxu0 0.0
  %1383 = vmatpush1.msra.mxu0 0.0
  %1384 = vmatprep.subr.mxu0 0.0
  %1385 = vmatpush1.msra.mxu0 0.0
  %1386 = vmatprep.subr.mxu0 0.0
  %1387 = vmatpush1.msra.mxu0 0.0
  %1388 = vmatprep.subr.mxu0 0.0
  %1389 = vmatpush1.msra.mxu0 0.0
  %1390 = vmatprep.subr.mxu0 0.0
  %1391 = vmatpush1.msra.mxu0 0.0
  %1392 = vmatprep.mubr.f32.mxu0 0.0
  %1393 = vmatmul.mubr.f32.gmra.mrb[0].mxu0 %v1255
  %v1394 = vpop.f32.mrb[0].mxu0
  %v1395 = vadd.f32 0.0, %v1394
  %v1396 = vpop.f32.mrb[0].mxu0
  %v1397 = vadd.f32 0.0, %v1396
  %1398 = vdwg.mxu0
  %1399 = vmatprep.subr.mxu0 %v1198
  %1400 = vmatpush1.msra.mxu0 %v1197
  %1401 = vmatprep.subr.mxu0 %v1204
  %1402 = vmatpush1.msra.mxu0 %v1203
  %1403 = vmatprep.subr.mxu0 %v1210
  %1404 = vmatpush1.msra.mxu0 %v1209
  %1405 = vmatprep.subr.mxu0 %v1216
  %1406 = vmatpush1.msra.mxu0 %v1215
  %1407 = vmatprep.subr.mxu0 %v1222
  %1408 = vmatpush1.msra.mxu0 %v1221
  %1409 = vmatprep.subr.mxu0 %v1228
  %1410 = vmatpush1.msra.mxu0 %v1227
  %1411 = vmatprep.subr.mxu0 %v1234
  %1412 = vmatpush1.msra.mxu0 %v1233
  %1413 = vmatprep.subr.mxu0 %v1240
  %1414 = vmatpush1.msra.mxu0 %v1239
  %1415 = vmatprep.subr.mxu0 %v1246
  %1416 = vmatpush1.msra.mxu0 %v1245
  %1417 = vmatprep.subr.mxu0 %v1252
  %1418 = vmatpush1.msra.mxu0 %v1251
  %1419 = vmatprep.subr.mxu0 0.0
  %1420 = vmatpush1.msra.mxu0 0.0
  %1421 = vmatprep.subr.mxu0 0.0
  %1422 = vmatpush1.msra.mxu0 0.0
  %1423 = vmatprep.subr.mxu0 0.0
  %1424 = vmatpush1.msra.mxu0 0.0
  %1425 = vmatprep.subr.mxu0 0.0
  %1426 = vmatpush1.msra.mxu0 0.0
  %1427 = vmatprep.subr.mxu0 0.0
  %1428 = vmatpush1.msra.mxu0 0.0
  %1429 = vmatprep.subr.mxu0 0.0
  %1430 = vmatpush1.msra.mxu0 0.0
  %1431 = vmatprep.subr.mxu0 0.0
  %1432 = vmatpush1.msra.mxu0 0.0
  %1433 = vmatprep.subr.mxu0 0.0
  %1434 = vmatpush1.msra.mxu0 0.0
  %1435 = vmatprep.subr.mxu0 0.0
  %1436 = vmatpush1.msra.mxu0 0.0
  %1437 = vmatprep.subr.mxu0 0.0
  %1438 = vmatpush1.msra.mxu0 0.0
  %1439 = vmatprep.subr.mxu0 0.0
  %1440 = vmatpush1.msra.mxu0 0.0
  %1441 = vmatprep.subr.mxu0 0.0
  %1442 = vmatpush1.msra.mxu0 0.0
  %1443 = vmatprep.subr.mxu0 0.0
  %1444 = vmatpush1.msra.mxu0 0.0
  %1445 = vmatprep.subr.mxu0 0.0
  %1446 = vmatpush1.msra.mxu0 0.0
  %1447 = vmatprep.subr.mxu0 0.0
  %1448 = vmatpush1.msra.mxu0 0.0
  %1449 = vmatprep.subr.mxu0 0.0
  %1450 = vmatpush1.msra.mxu0 0.0
  %1451 = vmatprep.subr.mxu0 0.0
  %1452 = vmatpush1.msra.mxu0 0.0
  %1453 = vmatprep.subr.mxu0 0.0
  %1454 = vmatpush1.msra.mxu0 0.0
  %1455 = vmatprep.subr.mxu0 0.0
  %1456 = vmatpush1.msra.mxu0 0.0
  %1457 = vmatprep.subr.mxu0 0.0
  %1458 = vmatpush1.msra.mxu0 0.0
  %1459 = vmatprep.subr.mxu0 0.0
  %1460 = vmatpush1.msra.mxu0 0.0
  %1461 = vmatprep.subr.mxu0 0.0
  %1462 = vmatpush1.msra.mxu0 0.0
  %1463 = vmatprep.mubr.f32.mxu0 0.0
  %1464 = vmatmul.mubr.f32.gmra.mrb[0].mxu0 %v1255
  %v1465 = vpop.f32.mrb[0].mxu0
  %v1466 = vadd.f32 0.0, %v1465
  %v1467 = vpop.f32.mrb[0].mxu0
  %v1468 = vadd.f32 0.0, %v1467
  %1469 = vdwg.mxu0
  %v1470 = vmul.f32 %v1324, %v692
  %v1471 = vmul.f32 %v1326, %v696
  %v1472 = vmul.f32 %v1395, %v700
  %v1473 = vmul.f32 %v1397, %v704
  %v1474 = vmul.f32 %v1466, %v708
  %v1475 = vmul.f32 %v1468, %v712
  %v1476 = vadd.f32 %v1470, %v1471
  %v1477 = vadd.f32 %v1476, %v1472
  %v1478 = vadd.f32 %v1477, %v1473
  %v1479 = vadd.f32 %v1478, %v1474
  %v1480 = vadd.f32 %v1479, %v1475
  %1481 = vadd.xlane.f32.xlu0 %v1480
  %v1482 = vpop.xlane.xlu0 %1481
  %v1483 = vmul.f32 %v1324, %v1470
  %v1484 = vmul.f32 %v1326, %v1471
  %v1485 = vmul.f32 %v1395, %v1472
  %v1486 = vmul.f32 %v1397, %v1473
  %v1487 = vmul.f32 %v1466, %v1474
  %v1488 = vmul.f32 %v1468, %v1475
  %v1489 = vadd.f32 %v1483, %v1484
  %v1490 = vadd.f32 %v1489, %v1485
  %v1491 = vadd.f32 %v1490, %v1486
  %v1492 = vadd.f32 %v1491, %v1487
  %v1493 = vadd.f32 %v1492, %v1488
  %1494 = vadd.xlane.f32.xlu0 %v1493
  %v1495 = vpop.xlane.xlu0 %1494
  %v1496 = vmul.f32 %v1482, 0.001953125
  %v1497 = vmul.f32 %v1495, 0.001953125
  %v1498 = vmul.f32 %v1496, %v1496
  %v1499 = vsub.f32 %v1497, %v1498
  %v1500 = vmax.f32 %v1499, 0.0
  %v1501 = vadd.f32 %v1500, 1e-05
  %v1502 = vrsqrt.pop %v1501
  %v1503 = vmul.f32 %v1502, %v21
  %v1504 = vmul.f32 %v1496, %v1503
  %1506 = vrot.lane.b32.xlu0 %v1504, 1
  %v1507 = vpop.permute.xlu0 %1506
  %v1509 = vsub.f32 %v21, %v1507
  %1511 = vset.pattern.permute.xlu0 2
  %1512 = vperm.xlu0 %1511, %v1503
  %v1513 = vpop.permute.xlu0 %1512
  %v1515 = vmul.f32 %v1324, %v1513
  %v1516 = vmul.f32 %v1326, %v1513
  %v1517 = vmul.f32 %v1395, %v1513
  %v1518 = vmul.f32 %v1397, %v1513
  %v1519 = vmul.f32 %v1466, %v1513
  %v1520 = vmul.f32 %v1468, %v1513
  %1522 = vset.pattern.permute.xlu0 3
  %1523 = vperm.xlu0 %1522, %v1509
  %v1524 = vpop.permute.xlu0 %1523
  %v1526 = vadd.f32 %v1515, %v1524
  %v1527 = vadd.f32 %v1516, %v1524
  %v1528 = vadd.f32 %v1517, %v1524
  %v1529 = vadd.f32 %v1518, %v1524
  %v1530 = vadd.f32 %v1519, %v1524
  %v1531 = vadd.f32 %v1520, %v1524
  %v1532 = vmax.f32 %v1526, 0.0
  %v1533 = vmax.f32 %v1527, 0.0
  %v1534 = vmax.f32 %v1528, 0.0
  %v1535 = vmax.f32 %v1529, 0.0
  %v1536 = vmax.f32 %v1530, 0.0
  %v1537 = vmax.f32 %v1531, 0.0
  %1538 = vst [vmem:[%s5] sm:$0xff] %v1532
  %1539 = vst [vmem:[%s5 + $0x8] sm:$0xff] %v1533
  %1540 = vst [vmem:[%s5 + $0x10] sm:$0xff] %v1534
  %1541 = vst [vmem:[%s5 + $0x18] sm:$0xff] %v1535
  %1542 = vst [vmem:[%s5 + $0x20] sm:$0xff] %v1536
  %1543 = vst [vmem:[%s5 + $0x28] sm:$0xff] %v1537
  // Predicated region
  $region22: #{resid_conv_block_forward.1} parent=0 // pred_check
    _
  $region23: #{resid_conv_block_forward.1} parent=0 // pred_check_branch
    %1545 = sbr.rel (0) target = $region25
  $region24: #{resid_conv_block_forward.1} parent=0 // pred_region
    _
  $region25: #{resid_conv_block_forward.1} parent=0 // pred_fallthru
    _
  // Predicated region
  $region26: #{resid_conv_block_forward.1} parent=0 // pred_check
    _
  $region27: #{resid_conv_block_forward.1} parent=0 // pred_check_branch
    %1547 = sbr.rel (0) target = $region29
  $region28: #{resid_conv_block_forward.1} parent=0 // pred_region
    _
  $region29: #{resid_conv_block_forward.1} parent=0 // pred_fallthru
    _

</llo_original>
